<compile_context>
chip_gen: v7x
topology: tpu7x:2x2x1
jax: 0.10.0
libtpu: 0.0.40
codegen_flags: <defaults>
</compile_context>

<pallas_src>
import functools
import math

import jax
import jax.numpy as jnp
from jax import lax
from jax.experimental import pallas as pl
from jax.experimental.pallas import tpu as pltpu

# Contract the last dim of both operands: A @ B^T (same dnums flash-attention uses).
_TRANS_B = (((1,), (1,)), ((), ()))
_PREC = jax.lax.Precision.HIGHEST


def _round_up(x: int, m: int) -> int:
    return ((x + m - 1) // m) * m


# ---------------------------------------------------------------------------
# Kernel 1: complex linear  y = x @ W^T + b   (x: (TM, K), W: (N, K), b: (1, N))
# ---------------------------------------------------------------------------
def _clinear_kernel(xr_ref, xi_ref, wr_ref, wi_ref, br_ref, bi_ref,
                    yr_ref, yi_ref):
    xr = xr_ref[...]
    xi = xi_ref[...]
    wr = wr_ref[...]
    wi = wi_ref[...]
    rr = lax.dot_general(xr, wr, _TRANS_B, precision=_PREC,
                         preferred_element_type=jnp.float32)
    ii = lax.dot_general(xi, wi, _TRANS_B, precision=_PREC,
                         preferred_element_type=jnp.float32)
    ri = lax.dot_general(xr, wi, _TRANS_B, precision=_PREC,
                         preferred_element_type=jnp.float32)
    ir = lax.dot_general(xi, wr, _TRANS_B, precision=_PREC,
                         preferred_element_type=jnp.float32)
    yr_ref[...] = rr - ii + br_ref[...]
    yi_ref[...] = ri + ir + bi_ref[...]


def _complex_linear(xr, xi, wr, wi, br, bi):
    """(M,K) x (N,K)^T + (N,) complex linear on split planes -> (M,N), (M,N)."""
    M, K = xr.shape
    Nout = wr.shape[0]
    # Row tile: full array if small, otherwise 512-row lane-dense blocks.
    TM = min(_round_up(M, 8), 512)
    M_pad = _round_up(M, TM)
    if M_pad != M:
        pad = M_pad - M
        xr = jnp.pad(xr, ((0, pad), (0, 0)))
        xi = jnp.pad(xi, ((0, pad), (0, 0)))

    x_spec = pl.BlockSpec((TM, K), lambda i: (i, 0))
    w_spec = pl.BlockSpec((Nout, K), lambda i: (0, 0))
    b_spec = pl.BlockSpec((1, Nout), lambda i: (0, 0))
    y_spec = pl.BlockSpec((TM, Nout), lambda i: (i, 0))

    yr, yi = pl.pallas_call(
        _clinear_kernel,
        out_shape=(
            jax.ShapeDtypeStruct((M_pad, Nout), jnp.float32),
            jax.ShapeDtypeStruct((M_pad, Nout), jnp.float32),
        ),
        grid_spec=pltpu.PrefetchScalarGridSpec(
            num_scalar_prefetch=0,
            grid=(M_pad // TM,),
            in_specs=[x_spec, x_spec, w_spec, w_spec, b_spec, b_spec],
            out_specs=(y_spec, y_spec),
        ),
        compiler_params=pltpu.CompilerParams(
            dimension_semantics=("parallel",)),
    )(xr, xi, wr, wi, br.reshape(1, Nout), bi.reshape(1, Nout))
    return yr[:M], yi[:M]


# ---------------------------------------------------------------------------
# Kernel 2: per-(batch*head) attention core
# ---------------------------------------------------------------------------
def _attn_kernel(qr_ref, qi_ref, kr_ref, ki_ref, vr_ref, vi_ref,
                 or_ref, oi_ref, pw_ref, *, scale):
    qr = qr_ref[0]          # (L, Dh)
    qi = qi_ref[0]
    kr = kr_ref[0]          # (S, Dh)
    ki = ki_ref[0]
    vr = vr_ref[0]
    vi = vi_ref[0]

    # Re[Q K^H] = Qr Kr^T + Qi Ki^T   (conjugate cancels the imag cross terms)
    s = (lax.dot_general(qr, kr, _TRANS_B, precision=_PREC,
                         preferred_element_type=jnp.float32) +
         lax.dot_general(qi, ki, _TRANS_B, precision=_PREC,
                         preferred_element_type=jnp.float32)) * scale

    m = jnp.max(s, axis=-1, keepdims=True)
    e = jnp.exp(s - m)
    p = e / jnp.sum(e, axis=-1, keepdims=True)          # (L, S), real weights

    or_ref[0] = jnp.dot(p, vr, precision=_PREC,
                        preferred_element_type=jnp.float32)
    oi_ref[0] = jnp.dot(p, vi, precision=_PREC,
                        preferred_element_type=jnp.float32)
    pw_ref[0] = p


def _attention_core(qr, qi, kr, ki, vr, vi, scale):
    BH, L, Dh = qr.shape
    S = kr.shape[1]
    q_spec = pl.BlockSpec((1, L, Dh), lambda b: (b, 0, 0))
    kv_spec = pl.BlockSpec((1, S, Dh), lambda b: (b, 0, 0))
    o_spec = pl.BlockSpec((1, L, Dh), lambda b: (b, 0, 0))
    p_spec = pl.BlockSpec((1, L, S), lambda b: (b, 0, 0))

    kernel = functools.partial(_attn_kernel, scale=scale)
    o_r, o_i, pw = pl.pallas_call(
        kernel,
        out_shape=(
            jax.ShapeDtypeStruct((BH, L, Dh), jnp.float32),
            jax.ShapeDtypeStruct((BH, L, Dh), jnp.float32),
            jax.ShapeDtypeStruct((BH, L, S), jnp.float32),
        ),
        grid_spec=pltpu.PrefetchScalarGridSpec(
            num_scalar_prefetch=0,
            grid=(BH,),
            in_specs=[q_spec, q_spec, kv_spec, kv_spec, kv_spec, kv_spec],
            out_specs=(o_spec, o_spec, p_spec),
        ),
        compiler_params=pltpu.CompilerParams(
            dimension_semantics=("parallel",)),
    )(qr, qi, kr, ki, vr, vi)
    return o_r, o_i, pw


# ---------------------------------------------------------------------------
# Full forward pass (batch_first=False, i.e. inputs are (L, N, E) complex64)
# ---------------------------------------------------------------------------
def complex_multihead_attention(query, key, value,
                                in_proj_weight, in_proj_bias,
                                out_proj_weight, out_proj_bias,
                                num_heads):
    """Forward of torchcvnn's complex MultiheadAttention (no masks, no dropout).

    query: (L, N, E) complex64;  key/value: (S, N, E) complex64
    in_proj_weight: (3E, E), in_proj_bias: (3E,)
    out_proj_weight: (E, E), out_proj_bias: (E,)
    Returns (attn_output (L, N, E) complex64,
             attn_output_weights (N, L, S) float32, averaged over heads).
    """
    L, N, E = query.shape
    S = key.shape[0]
    H = num_heads
    Dh = E // H
    assert Dh * H == E, "embed_dim must be divisible by num_heads"

    def split(z):
        return jnp.real(z).astype(jnp.float32), jnp.imag(z).astype(jnp.float32)

    win_r, win_i = split(in_proj_weight)        # (3E, E)
    bin_r, bin_i = split(in_proj_bias)          # (3E,)
    wo_r, wo_i = split(out_proj_weight)         # (E, E)
    bo_r, bo_i = split(out_proj_bias)           # (E,)

    q_r, q_i = split(query.reshape(L * N, E))

    if (key is query) and (value is query):
        # Self-attention fast path: one fused QKV GEMM (lane-dense (M, 3E) output).
        qkv_r, qkv_i = _complex_linear(q_r, q_i, win_r, win_i, bin_r, bin_i)
        pq_r, pk_r, pv_r = qkv_r[:, :E], qkv_r[:, E:2 * E], qkv_r[:, 2 * E:]
        pq_i, pk_i, pv_i = qkv_i[:, :E], qkv_i[:, E:2 * E], qkv_i[:, 2 * E:]
    else:
        k_r, k_i = split(key.reshape(S * N, E))
        v_r, v_i = split(value.reshape(S * N, E))
        pq_r, pq_i = _complex_linear(q_r, q_i, win_r[:E], win_i[:E],
                                     bin_r[:E], bin_i[:E])
        pk_r, pk_i = _complex_linear(k_r, k_i, win_r[E:2 * E], win_i[E:2 * E],
                                     bin_r[E:2 * E], bin_i[E:2 * E])
        pv_r, pv_i = _complex_linear(v_r, v_i, win_r[2 * E:], win_i[2 * E:],
                                     bin_r[2 * E:], bin_i[2 * E:])

    # (T*N, E) -> (N*H, T, Dh)   (same layout as torch's reshape + transpose)
    def to_heads(x, T):
        return x.reshape(T, N * H, Dh).swapaxes(0, 1)

    hq_r, hq_i = to_heads(pq_r, L), to_heads(pq_i, L)
    hk_r, hk_i = to_heads(pk_r, S), to_heads(pk_i, S)
    hv_r, hv_i = to_heads(pv_r, S), to_heads(pv_i, S)

    scale = 1.0 / math.sqrt(Dh)
    o_r, o_i, pw = _attention_core(hq_r, hq_i, hk_r, hk_i, hv_r, hv_i, scale)

    # (N*H, L, Dh) -> (L*N, E)
    def merge(o):
        return o.swapaxes(0, 1).reshape(L * N, E)

    y_r, y_i = _complex_linear(merge(o_r), merge(o_i), wo_r, wo_i, bo_r, bo_i)

    attn_output = jax.lax.complex(y_r, y_i).reshape(L, N, E).astype(query.dtype)
    attn_weights = pw.reshape(N, H, L, S).mean(axis=1)   # average_attn_weights=True
    return attn_output, attn_weights


# ---------------------------------------------------------------------------
# Pure-JAX reference (mirrors the PyTorch forward semantics)
# ---------------------------------------------------------------------------
def _mha_ref(query, key, value, in_proj_weight, in_proj_bias,
             out_proj_weight, out_proj_bias, num_heads):
    L, N, E = query.shape
    S = key.shape[0]
    H = num_heads
    Dh = E // H
    Wq, Wk, Wv = in_proj_weight[:E], in_proj_weight[E:2 * E], in_proj_weight[2 * E:]
    bq, bk, bv = in_proj_bias[:E], in_proj_bias[E:2 * E], in_proj_bias[2 * E:]

    q = jnp.einsum('lne,fe->lnf', query, Wq, precision=_PREC) + bq
    k = jnp.einsum('sne,fe->snf', key, Wk, precision=_PREC) + bk
    v = jnp.einsum('sne,fe->snf', value, Wv, precision=_PREC) + bv

    q = q.reshape(L, N * H, Dh).swapaxes(0, 1)   # (NH, L, Dh)
    k = k.reshape(S, N * H, Dh).swapaxes(0, 1)
    v = v.reshape(S, N * H, Dh).swapaxes(0, 1)

    scale = 1.0 / math.sqrt(Dh)
    scores = jnp.real(jnp.einsum('bld,bsd->bls', q, jnp.conj(k),
                                 precision=_PREC)) * scale
    p = jax.nn.softmax(scores, axis=-1)
    o = jnp.einsum('bls,bsd->bld', p.astype(q.dtype), v, precision=_PREC)
    o = o.swapaxes(0, 1).reshape(L * N, E)
    out = jnp.einsum('me,fe->mf', o, out_proj_weight, precision=_PREC) + out_proj_bias
    out = out.reshape(L, N, E)
    weights = p.reshape(N, H, L, S).mean(axis=1)
    return out, weights


if __name__ == "__main__":
    root = jax.random.PRNGKey(0)
    ks = jax.random.split(root, 6)

    L, N, E, H = 8, 2, 32, 4   # seq=8, batch=2, embed=32, heads=4 (head_dim=8)

    def crandn(k, shape, scale=1.0):
        k1, k2 = jax.random.split(k)
        re = jax.random.normal(k1, shape, dtype=jnp.float32)
        im = jax.random.normal(k2, shape, dtype=jnp.float32)
        return jax.lax.complex(re, im) * scale

    src = crandn(ks[0], (L, N, E))
    in_proj_weight = crandn(ks[1], (3 * E, E), scale=1.0 / math.sqrt(2 * E))
    in_proj_bias = crandn(ks[2], (3 * E,), scale=0.1)
    out_proj_weight = crandn(ks[3], (E, E), scale=1.0 / math.sqrt(2 * E))
    out_proj_bias = crandn(ks[4], (E,), scale=0.1)

    attn_out, attn_w = complex_multihead_attention(
        src, src, src, in_proj_weight, in_proj_bias,
        out_proj_weight, out_proj_bias, H)
    attn_out = jax.block_until_ready(attn_out)
    attn_w = jax.block_until_ready(attn_w)

    ref_out, ref_w = _mha_ref(src, src, src, in_proj_weight, in_proj_bias,
                              out_proj_weight, out_proj_bias, H)
    ref_out = jax.block_until_ready(ref_out)
    ref_w = jax.block_until_ready(ref_w)

    assert attn_out.shape == (L, N, E) and attn_out.dtype == src.dtype
    assert attn_w.shape == (N, L, L)
    assert jnp.allclose(attn_out, ref_out, atol=1e-4, rtol=1e-4), \
        "attn_output mismatch vs reference"
    assert jnp.allclose(attn_w, ref_w, atol=1e-4, rtol=1e-4), \
        "attn_weights mismatch vs reference"
    print("KERNEL_OK")
</pallas_src>

<mosaic_0001>
module attributes {stable_mosaic.version = 11 : i64} {
  func.func @_clinear_kernel(%arg0: i32, %arg1: memref<16x32xf32, #tpu.memory_space<vmem>>, %arg2: memref<16x32xf32, #tpu.memory_space<vmem>>, %arg3: memref<96x32xf32, #tpu.memory_space<vmem>>, %arg4: memref<96x32xf32, #tpu.memory_space<vmem>>, %arg5: memref<1x96xf32, #tpu.memory_space<vmem>>, %arg6: memref<1x96xf32, #tpu.memory_space<vmem>>, %arg7: memref<16x96xf32, #tpu.memory_space<vmem>>, %arg8: memref<16x96xf32, #tpu.memory_space<vmem>>) attributes {dimension_semantics = [#tpu.dimension_semantics<parallel>], iteration_bounds = array<i64: 1>, scalar_prefetch = 0 : i64, scratch_operands = 0 : i64, tpu.core_type = #tpu.core_type<tc>, window_params = [{transform_indices = @transform_0, window_bounds = array<i64: 16, 32>}, {transform_indices = @transform_1, window_bounds = array<i64: 16, 32>}, {pipeline_mode = #tpu.pipeline_mode<synchronous>, transform_indices = @transform_2, window_bounds = array<i64: 96, 32>}, {pipeline_mode = #tpu.pipeline_mode<synchronous>, transform_indices = @transform_3, window_bounds = array<i64: 96, 32>}, {pipeline_mode = #tpu.pipeline_mode<synchronous>, transform_indices = @transform_4, window_bounds = array<i64: 1, 96>}, {pipeline_mode = #tpu.pipeline_mode<synchronous>, transform_indices = @transform_5, window_bounds = array<i64: 1, 96>}, {transform_indices = @transform_6, window_bounds = array<i64: 16, 96>}, {transform_indices = @transform_7, window_bounds = array<i64: 16, 96>}]} {
    %c0 = arith.constant 0 : index
    %c0_0 = arith.constant 0 : index
    %0 = vector.load %arg1[%c0, %c0_0] : memref<16x32xf32, #tpu.memory_space<vmem>>, vector<16x32xf32>
    %c0_1 = arith.constant 0 : index
    %c0_2 = arith.constant 0 : index
    %1 = vector.load %arg2[%c0_1, %c0_2] : memref<16x32xf32, #tpu.memory_space<vmem>>, vector<16x32xf32>
    %c0_3 = arith.constant 0 : index
    %c0_4 = arith.constant 0 : index
    %2 = vector.load %arg3[%c0_3, %c0_4] : memref<96x32xf32, #tpu.memory_space<vmem>>, vector<96x32xf32>
    %c0_5 = arith.constant 0 : index
    %c0_6 = arith.constant 0 : index
    %3 = vector.load %arg4[%c0_5, %c0_6] : memref<96x32xf32, #tpu.memory_space<vmem>>, vector<96x32xf32>
    %cst = arith.constant dense<0.000000e+00> : vector<16x96xf32>
    %4 = tpu.matmul %0, %2, %cst {dimension_numbers = #tpu.dot_dimension_numbers<[1], [1], [0], [0], [0, 0, 1, 0], [], []>, precision = #tpu.contract_precision<fp32>} : vector<16x32xf32>, vector<96x32xf32>, vector<16x96xf32> -> vector<16x96xf32>
    %cst_7 = arith.constant dense<0.000000e+00> : vector<16x96xf32>
    %5 = tpu.matmul %1, %3, %cst_7 {dimension_numbers = #tpu.dot_dimension_numbers<[1], [1], [0], [0], [0, 0, 1, 0], [], []>, precision = #tpu.contract_precision<fp32>} : vector<16x32xf32>, vector<96x32xf32>, vector<16x96xf32> -> vector<16x96xf32>
    %cst_8 = arith.constant dense<0.000000e+00> : vector<16x96xf32>
    %6 = tpu.matmul %0, %3, %cst_8 {dimension_numbers = #tpu.dot_dimension_numbers<[1], [1], [0], [0], [0, 0, 1, 0], [], []>, precision = #tpu.contract_precision<fp32>} : vector<16x32xf32>, vector<96x32xf32>, vector<16x96xf32> -> vector<16x96xf32>
    %cst_9 = arith.constant dense<0.000000e+00> : vector<16x96xf32>
    %7 = tpu.matmul %1, %2, %cst_9 {dimension_numbers = #tpu.dot_dimension_numbers<[1], [1], [0], [0], [0, 0, 1, 0], [], []>, precision = #tpu.contract_precision<fp32>} : vector<16x32xf32>, vector<96x32xf32>, vector<16x96xf32> -> vector<16x96xf32>
    %8 = arith.subf %4, %5 : vector<16x96xf32>
    %c0_10 = arith.constant 0 : index
    %c0_11 = arith.constant 0 : index
    %9 = vector.load %arg5[%c0_10, %c0_11] : memref<1x96xf32, #tpu.memory_space<vmem>>, vector<1x96xf32>
    %10 = vector.broadcast %9 : vector<1x96xf32> to vector<16x96xf32>
    %11 = arith.addf %8, %10 : vector<16x96xf32>
    %c0_12 = arith.constant 0 : index
    %c0_13 = arith.constant 0 : index
    %12 = vector.load %arg7[%c0_12, %c0_13] : memref<16x96xf32, #tpu.memory_space<vmem>>, vector<16x96xf32>
    tpu.vector_store %arg7[%c0_12, %c0_13], %11 {strides = array<i32>} : memref<16x96xf32, #tpu.memory_space<vmem>>, vector<16x96xf32>,
    %13 = arith.addf %6, %7 : vector<16x96xf32>
    %c0_14 = arith.constant 0 : index
    %c0_15 = arith.constant 0 : index
    %14 = vector.load %arg6[%c0_14, %c0_15] : memref<1x96xf32, #tpu.memory_space<vmem>>, vector<1x96xf32>
    %15 = vector.broadcast %14 : vector<1x96xf32> to vector<16x96xf32>
    %16 = arith.addf %13, %15 : vector<16x96xf32>
    %c0_16 = arith.constant 0 : index
    %c0_17 = arith.constant 0 : index
    %17 = vector.load %arg8[%c0_16, %c0_17] : memref<16x96xf32, #tpu.memory_space<vmem>>, vector<16x96xf32>
    tpu.vector_store %arg8[%c0_16, %c0_17], %16 {strides = array<i32>} : memref<16x96xf32, #tpu.memory_space<vmem>>, vector<16x96xf32>,
    return
  }
  func.func @transform_0(%arg0: i32) -> (i32, i32) {
    %c0_i32 = arith.constant 0 : i32
    %c0_i32_0 = arith.constant 0 : i32
    return %arg0, %c0_i32 : i32, i32
  }
  func.func @transform_1(%arg0: i32) -> (i32, i32) {
    %c0_i32 = arith.constant 0 : i32
    %c0_i32_0 = arith.constant 0 : i32
    return %arg0, %c0_i32 : i32, i32
  }
  func.func @transform_2(%arg0: i32) -> (i32, i32) {
    %c0_i32 = arith.constant 0 : i32
    %c0_i32_0 = arith.constant 0 : i32
    %c0_i32_1 = arith.constant 0 : i32
    return %c0_i32, %c0_i32_0 : i32, i32
  }
  func.func @transform_3(%arg0: i32) -> (i32, i32) {
    %c0_i32 = arith.constant 0 : i32
    %c0_i32_0 = arith.constant 0 : i32
    %c0_i32_1 = arith.constant 0 : i32
    return %c0_i32, %c0_i32_0 : i32, i32
  }
  func.func @transform_4(%arg0: i32) -> (i32, i32) {
    %c0_i32 = arith.constant 0 : i32
    %c0_i32_0 = arith.constant 0 : i32
    %c0_i32_1 = arith.constant 0 : i32
    return %c0_i32, %c0_i32_0 : i32, i32
  }
  func.func @transform_5(%arg0: i32) -> (i32, i32) {
    %c0_i32 = arith.constant 0 : i32
    %c0_i32_0 = arith.constant 0 : i32
    %c0_i32_1 = arith.constant 0 : i32
    return %c0_i32, %c0_i32_0 : i32, i32
  }
  func.func @transform_6(%arg0: i32) -> (i32, i32) {
    %c0_i32 = arith.constant 0 : i32
    %c0_i32_0 = arith.constant 0 : i32
    return %arg0, %c0_i32 : i32, i32
  }
  func.func @transform_7(%arg0: i32) -> (i32, i32) {
    %c0_i32 = arith.constant 0 : i32
    %c0_i32_0 = arith.constant 0 : i32
    return %arg0, %c0_i32 : i32, i32
  }
}

</mosaic_0001>

<llo_original>
// kernel: tpu_custom_call.1
$region0: #{tpu_custom_call.1}
  #allocation0 [shape = 'u32[]', space=smem, size = 0x4, offset = 0x4, fixed_abs, tag = 'smem constant byte address 0x4 - core index']
  #allocation1 [shape = 'u32[144,128]{1,0:T(1,128)}', space=vmem, size = 0x12000, scoped, tag = 'internal scratch']
  %s0 = inlined_call_operand.vmem [shape: f32[16,32], index: 0, kind: input, shape index: {}]
  %s1 = inlined_call_operand.vmem [shape: f32[16,32], index: 1, kind: input, shape index: {}]
  %s2 = inlined_call_operand.vmem [shape: f32[96,32], index: 2, kind: input, shape index: {}]
  %s3 = inlined_call_operand.vmem [shape: f32[96,32], index: 3, kind: input, shape index: {}]
  %s4 = inlined_call_operand.vmem [shape: f32[1,96], index: 4, kind: input, shape index: {}]
  %s5 = inlined_call_operand.vmem [shape: f32[1,96], index: 5, kind: input, shape index: {}]
  %s6 = inlined_call_operand.hbm [shape: f32[16,96], index: 6, kind: output, shape index: {0}]
  %s7 = inlined_call_operand.hbm [shape: f32[16,96], index: 7, kind: output, shape index: {1}]
  %8 = xla_tuple %s6, %s7
  %s9 = sld [smem:[#allocation0]]
  $region42: #{tpu_custom_call.1} parent=0
    _
  %s11 = ssub.s32 1, %s9
  %s12 = scalar_select 0, %s11, %s9
  $region1: #{tpu_custom_call.1} parent=0
    #allocation2 [shape = 'u8[8192]{0}', space=vmem, size = 0x2000, scoped, tag = 'output window, operand 0, single buffered']
    #allocation3 [shape = 's32[1]{0}', space=sflag, size = 0x4, scoped, tag = 'scoped memory for tpu_custom_call.1']
    #allocation4 [shape = 'u8[8192]{0}', space=vmem, size = 0x2000, scoped, tag = 'output window, operand 1, single buffered']
    #allocation5 [shape = 's32[1]{0}', space=sflag, size = 0x4, scoped, tag = 'scoped memory for tpu_custom_call.1']
    %13 = vsyncpa [#allocation3], 0
    %14 = vsyncpa [#allocation5], 0
    // Predicated region
    $region2: #{tpu_custom_call.1} parent=1 // pred_check
      _
    $region3: #{tpu_custom_call.1} parent=1 // pred_check_branch
      %16 = sbr.rel (0) target = $region5
    $region4: #{tpu_custom_call.1} parent=1 // pred_region
      _
    $region5: #{tpu_custom_call.1} parent=1 // pred_fallthru
      _
    // Predicated region
    $region6: #{tpu_custom_call.1} parent=1 // pred_check
      _
    $region7: #{tpu_custom_call.1} parent=1 // pred_check_branch
      %18 = sbr.rel (0) target = $region9
    $region8: #{tpu_custom_call.1} parent=1 // pred_region
      _
    $region9: #{tpu_custom_call.1} parent=1 // pred_fallthru
      _
    // Predicated region
    $region10: #{tpu_custom_call.1} parent=1 // pred_check
      _
    $region11: #{tpu_custom_call.1} parent=1 // pred_check_branch
      %20 = sbr.rel (0) target = $region13
    $region12: #{tpu_custom_call.1} parent=1 // pred_region
      _
    $region13: #{tpu_custom_call.1} parent=1 // pred_fallthru
      _
    // Predicated region
    $region14: #{tpu_custom_call.1} parent=1 // pred_check
      _
    $region15: #{tpu_custom_call.1} parent=1 // pred_check_branch
      %22 = sbr.rel (0) target = $region17
    $region16: #{tpu_custom_call.1} parent=1 // pred_region
      _
    $region17: #{tpu_custom_call.1} parent=1 // pred_fallthru
      _
    // Predicated region
    $region18: #{tpu_custom_call.1} parent=1 // pred_check
      _
    $region19: #{tpu_custom_call.1} parent=1 // pred_check_branch
      %24 = sbr.rel (0) target = $region21
    $region20: #{tpu_custom_call.1} parent=1 // pred_region
      _
    $region21: #{tpu_custom_call.1} parent=1 // pred_fallthru
      _
    // Predicated region
    $region22: #{tpu_custom_call.1} parent=1 // pred_check
      _
    $region23: #{tpu_custom_call.1} parent=1 // pred_check_branch
      %26 = sbr.rel (0) target = $region25
    $region24: #{tpu_custom_call.1} parent=1 // pred_region
      _
    $region25: #{tpu_custom_call.1} parent=1 // pred_fallthru
      _
    %v27 = vld [vmem:[%s0] sm:$0xff]
    %v28 = vld [vmem:[%s0 + $0x8] sm:$0xff]
    %v29 = vld [vmem:[%s1] sm:$0xff]
    %v30 = vld [vmem:[%s1 + $0x8] sm:$0xff]
    %v31 = vld [vmem:[%s2] sm:$0xff]
    %v32 = vld [vmem:[%s2 + $0x8] sm:$0xff]
    %v33 = vld [vmem:[%s2 + $0x10] sm:$0xff]
    %v34 = vld [vmem:[%s2 + $0x18] sm:$0xff]
    %v35 = vld [vmem:[%s2 + $0x20] sm:$0xff]
    %v36 = vld [vmem:[%s2 + $0x28] sm:$0xff]
    %v37 = vld [vmem:[%s2 + $0x30] sm:$0xff]
    %v38 = vld [vmem:[%s2 + $0x38] sm:$0xff]
    %v39 = vld [vmem:[%s2 + $0x40] sm:$0xff]
    %v40 = vld [vmem:[%s2 + $0x48] sm:$0xff]
    %v41 = vld [vmem:[%s2 + $0x50] sm:$0xff]
    %v42 = vld [vmem:[%s2 + $0x58] sm:$0xff]
    %v43 = vld [vmem:[%s3] sm:$0xff]
    %v44 = vld [vmem:[%s3 + $0x8] sm:$0xff]
    %v45 = vld [vmem:[%s3 + $0x10] sm:$0xff]
    %v46 = vld [vmem:[%s3 + $0x18] sm:$0xff]
    %v47 = vld [vmem:[%s3 + $0x20] sm:$0xff]
    %v48 = vld [vmem:[%s3 + $0x28] sm:$0xff]
    %v49 = vld [vmem:[%s3 + $0x30] sm:$0xff]
    %v50 = vld [vmem:[%s3 + $0x38] sm:$0xff]
    %v51 = vld [vmem:[%s3 + $0x40] sm:$0xff]
    %v52 = vld [vmem:[%s3 + $0x48] sm:$0xff]
    %v53 = vld [vmem:[%s3 + $0x50] sm:$0xff]
    %v54 = vld [vmem:[%s3 + $0x58] sm:$0xff]
    %vm55 = vcmask 261120
    %v57 = vsel %vm55, %v27, 0
    %v60 = vsel %vm55, %v28, 0
    %v63 = vsel %vm55, %v31, 0
    %v66 = vsel %vm55, %v32, 0
    %v69 = vsel %vm55, %v33, 0
    %v72 = vsel %vm55, %v34, 0
    %v75 = vsel %vm55, %v35, 0
    %v78 = vsel %vm55, %v36, 0
    %v81 = vsel %vm55, %v37, 0
    %v84 = vsel %vm55, %v38, 0
    %v87 = vsel %vm55, %v39, 0
    %v90 = vsel %vm55, %v40, 0
    %v93 = vsel %vm55, %v41, 0
    %v96 = vsel %vm55, %v42, 0
    %98 = vmatprep.subr.mxu0 0.0
    %v99 = vand.u32 %v63, 4294901760
    %100 = vmatpush1.xpose.msra.mxu0 %v99
    %101 = vmatprep.subr.mxu0 0.0
    %v102 = vand.u32 %v66, 4294901760
    %103 = vmatpush1.xpose.msra.mxu0 %v102
    %104 = vmatprep.subr.mxu0 0.0
    %v105 = vand.u32 %v69, 4294901760
    %106 = vmatpush1.xpose.msra.mxu0 %v105
    %107 = vmatprep.subr.mxu0 0.0
    %v108 = vand.u32 %v72, 4294901760
    %109 = vmatpush1.xpose.msra.mxu0 %v108
    %110 = vmatprep.subr.mxu0 0.0
    %v111 = vand.u32 %v75, 4294901760
    %112 = vmatpush1.xpose.msra.mxu0 %v111
    %113 = vmatprep.subr.mxu0 0.0
    %v114 = vand.u32 %v78, 4294901760
    %115 = vmatpush1.xpose.msra.mxu0 %v114
    %116 = vmatprep.subr.mxu0 0.0
    %v117 = vand.u32 %v81, 4294901760
    %118 = vmatpush1.xpose.msra.mxu0 %v117
    %119 = vmatprep.subr.mxu0 0.0
    %v120 = vand.u32 %v84, 4294901760
    %121 = vmatpush1.xpose.msra.mxu0 %v120
    %122 = vmatprep.subr.mxu0 0.0
    %v123 = vand.u32 %v87, 4294901760
    %124 = vmatpush1.xpose.msra.mxu0 %v123
    %125 = vmatprep.subr.mxu0 0.0
    %v126 = vand.u32 %v90, 4294901760
    %127 = vmatpush1.xpose.msra.mxu0 %v126
    %128 = vmatprep.subr.mxu0 0.0
    %v129 = vand.u32 %v93, 4294901760
    %130 = vmatpush1.xpose.msra.mxu0 %v129
    %131 = vmatprep.subr.mxu0 0.0
    %v132 = vand.u32 %v96, 4294901760
    %133 = vmatpush1.xpose.msra.mxu0 %v132
    %134 = vmatprep.subr.mxu0 0.0
    %135 = vmatpush1.xpose.msra.mxu0 0.0
    %136 = vmatprep.subr.mxu0 0.0
    %137 = vmatpush1.xpose.msra.mxu0 0.0
    %138 = vmatprep.subr.mxu0 0.0
    %139 = vmatpush1.xpose.msra.mxu0 0.0
    %140 = vmatprep.subr.mxu0 0.0
    %141 = vmatpush1.xpose.msra.mxu0 0.0
    %142 = vmatprep.subr.mxu0 0.0
    %143 = vmatpush1.xpose.msra.mxu0 0.0
    %144 = vmatprep.subr.mxu0 0.0
    %145 = vmatpush1.xpose.msra.mxu0 0.0
    %146 = vmatprep.subr.mxu0 0.0
    %147 = vmatpush1.xpose.msra.mxu0 0.0
    %148 = vmatprep.subr.mxu0 0.0
    %149 = vmatpush1.xpose.msra.mxu0 0.0
    %150 = vmatprep.subr.mxu0 0.0
    %151 = vmatpush1.xpose.msra.mxu0 0.0
    %152 = vmatprep.subr.mxu0 0.0
    %153 = vmatpush1.xpose.msra.mxu0 0.0
    %154 = vmatprep.subr.mxu0 0.0
    %155 = vmatpush1.xpose.msra.mxu0 0.0
    %156 = vmatprep.subr.mxu0 0.0
    %157 = vmatpush1.xpose.msra.mxu0 0.0
    %158 = vmatprep.subr.mxu0 0.0
    %159 = vmatpush1.xpose.msra.mxu0 0.0
    %160 = vmatprep.subr.mxu0 0.0
    %161 = vmatpush1.xpose.msra.mxu0 0.0
    %162 = vmatprep.subr.mxu0 0.0
    %163 = vmatpush1.xpose.msra.mxu0 0.0
    %164 = vmatprep.subr.mxu0 0.0
    %165 = vmatpush1.xpose.msra.mxu0 0.0
    %166 = vmatprep.subr.mxu0 0.0
    %167 = vmatpush1.xpose.msra.mxu0 0.0
    %168 = vmatprep.subr.mxu0 0.0
    %169 = vmatpush1.xpose.msra.mxu0 0.0
    %170 = vmatprep.subr.mxu0 0.0
    %171 = vmatpush1.xpose.msra.mxu0 0.0
    %172 = vmatprep.subr.mxu0 0.0
    %173 = vmatpush1.xpose.msra.mxu0 0.0
    %174 = vmatprep.mubr.f32.mxu0 0.0
    %v175 = vand.u32 %v57, 4294901760
    %v176 = vsub.f32 %v57, %v175
    %v177 = vand.u32 %v176, 4294901760
    %v178 = vsub.f32 %v176, %v177
    %v179 = vand.u32 %v178, 4294901760
    %180 = vmatmul.mubr.f32.gmra.mrb[0].mxu0 %v179
    %v181 = vpop.f32.mrb[0].mxu0
    %v182 = vadd.f32 0.0, %v181
    %v183 = vpop.f32.mrb[0].mxu0
    %184 = vmatprep.mubr.f32.mxu0 0.0
    %v185 = vand.u32 %v60, 4294901760
    %v186 = vsub.f32 %v60, %v185
    %v187 = vand.u32 %v186, 4294901760
    %v188 = vsub.f32 %v186, %v187
    %v189 = vand.u32 %v188, 4294901760
    %190 = vmatmul.mubr.f32.gmra.mrb[0].mxu0 %v189
    %v191 = vpop.f32.mrb[0].mxu0
    %v192 = vadd.f32 0.0, %v191
    %v193 = vpop.f32.mrb[0].mxu0
    %194 = vdwg.mxu0
    %195 = vmatprep.subr.mxu0 0.0
    %v196 = vand.u32 %v63, 4294901760
    %v197 = vsub.f32 %v63, %v196
    %v198 = vand.u32 %v197, 4294901760
    %v199 = vsub.f32 %v197, %v198
    %v200 = vand.u32 %v199, 4294901760
    %201 = vmatpush1.xpose.msra.mxu0 %v200
    %202 = vmatprep.subr.mxu0 0.0
    %v203 = vand.u32 %v66, 4294901760
    %v204 = vsub.f32 %v66, %v203
    %v205 = vand.u32 %v204, 4294901760
    %v206 = vsub.f32 %v204, %v205
    %v207 = vand.u32 %v206, 4294901760
    %208 = vmatpush1.xpose.msra.mxu0 %v207
    %209 = vmatprep.subr.mxu0 0.0
    %v210 = vand.u32 %v69, 4294901760
    %v211 = vsub.f32 %v69, %v210
    %v212 = vand.u32 %v211, 4294901760
    %v213 = vsub.f32 %v211, %v212
    %v214 = vand.u32 %v213, 4294901760
    %215 = vmatpush1.xpose.msra.mxu0 %v214
    %216 = vmatprep.subr.mxu0 0.0
    %v217 = vand.u32 %v72, 4294901760
    %v218 = vsub.f32 %v72, %v217
    %v219 = vand.u32 %v218, 4294901760
    %v220 = vsub.f32 %v218, %v219
    %v221 = vand.u32 %v220, 4294901760
    %222 = vmatpush1.xpose.msra.mxu0 %v221
    %223 = vmatprep.subr.mxu0 0.0
    %v224 = vand.u32 %v75, 4294901760
    %v225 = vsub.f32 %v75, %v224
    %v226 = vand.u32 %v225, 4294901760
    %v227 = vsub.f32 %v225, %v226
    %v228 = vand.u32 %v227, 4294901760
    %229 = vmatpush1.xpose.msra.mxu0 %v228
    %230 = vmatprep.subr.mxu0 0.0
    %v231 = vand.u32 %v78, 4294901760
    %v232 = vsub.f32 %v78, %v231
    %v233 = vand.u32 %v232, 4294901760
    %v234 = vsub.f32 %v232, %v233
    %v235 = vand.u32 %v234, 4294901760
    %236 = vmatpush1.xpose.msra.mxu0 %v235
    %237 = vmatprep.subr.mxu0 0.0
    %v238 = vand.u32 %v81, 4294901760
    %v239 = vsub.f32 %v81, %v238
    %v240 = vand.u32 %v239, 4294901760
    %v241 = vsub.f32 %v239, %v240
    %v242 = vand.u32 %v241, 4294901760
    %243 = vmatpush1.xpose.msra.mxu0 %v242
    %244 = vmatprep.subr.mxu0 0.0
    %v245 = vand.u32 %v84, 4294901760
    %v246 = vsub.f32 %v84, %v245
    %v247 = vand.u32 %v246, 4294901760
    %v248 = vsub.f32 %v246, %v247
    %v249 = vand.u32 %v248, 4294901760
    %250 = vmatpush1.xpose.msra.mxu0 %v249
    %251 = vmatprep.subr.mxu0 0.0
    %v252 = vand.u32 %v87, 4294901760
    %v253 = vsub.f32 %v87, %v252
    %v254 = vand.u32 %v253, 4294901760
    %v255 = vsub.f32 %v253, %v254
    %v256 = vand.u32 %v255, 4294901760
    %257 = vmatpush1.xpose.msra.mxu0 %v256
    %258 = vmatprep.subr.mxu0 0.0
    %v259 = vand.u32 %v90, 4294901760
    %v260 = vsub.f32 %v90, %v259
    %v261 = vand.u32 %v260, 4294901760
    %v262 = vsub.f32 %v260, %v261
    %v263 = vand.u32 %v262, 4294901760
    %264 = vmatpush1.xpose.msra.mxu0 %v263
    %265 = vmatprep.subr.mxu0 0.0
    %v266 = vand.u32 %v93, 4294901760
    %v267 = vsub.f32 %v93, %v266
    %v268 = vand.u32 %v267, 4294901760
    %v269 = vsub.f32 %v267, %v268
    %v270 = vand.u32 %v269, 4294901760
    %271 = vmatpush1.xpose.msra.mxu0 %v270
    %272 = vmatprep.subr.mxu0 0.0
    %v273 = vand.u32 %v96, 4294901760
    %v274 = vsub.f32 %v96, %v273
    %v275 = vand.u32 %v274, 4294901760
    %v276 = vsub.f32 %v274, %v275
    %v277 = vand.u32 %v276, 4294901760
    %278 = vmatpush1.xpose.msra.mxu0 %v277
    %279 = vmatprep.subr.mxu0 0.0
    %280 = vmatpush1.xpose.msra.mxu0 0.0
    %281 = vmatprep.subr.mxu0 0.0
    %282 = vmatpush1.xpose.msra.mxu0 0.0
    %283 = vmatprep.subr.mxu0 0.0
    %284 = vmatpush1.xpose.msra.mxu0 0.0
    %285 = vmatprep.subr.mxu0 0.0
    %286 = vmatpush1.xpose.msra.mxu0 0.0
    %287 = vmatprep.subr.mxu0 0.0
    %288 = vmatpush1.xpose.msra.mxu0 0.0
    %289 = vmatprep.subr.mxu0 0.0
    %290 = vmatpush1.xpose.msra.mxu0 0.0
    %291 = vmatprep.subr.mxu0 0.0
    %292 = vmatpush1.xpose.msra.mxu0 0.0
    %293 = vmatprep.subr.mxu0 0.0
    %294 = vmatpush1.xpose.msra.mxu0 0.0
    %295 = vmatprep.subr.mxu0 0.0
    %296 = vmatpush1.xpose.msra.mxu0 0.0
    %297 = vmatprep.subr.mxu0 0.0
    %298 = vmatpush1.xpose.msra.mxu0 0.0
    %299 = vmatprep.subr.mxu0 0.0
    %300 = vmatpush1.xpose.msra.mxu0 0.0
    %301 = vmatprep.subr.mxu0 0.0
    %302 = vmatpush1.xpose.msra.mxu0 0.0
    %303 = vmatprep.subr.mxu0 0.0
    %304 = vmatpush1.xpose.msra.mxu0 0.0
    %305 = vmatprep.subr.mxu0 0.0
    %306 = vmatpush1.xpose.msra.mxu0 0.0
    %307 = vmatprep.subr.mxu0 0.0
    %308 = vmatpush1.xpose.msra.mxu0 0.0
    %309 = vmatprep.subr.mxu0 0.0
    %310 = vmatpush1.xpose.msra.mxu0 0.0
    %311 = vmatprep.subr.mxu0 0.0
    %312 = vmatpush1.xpose.msra.mxu0 0.0
    %313 = vmatprep.subr.mxu0 0.0
    %314 = vmatpush1.xpose.msra.mxu0 0.0
    %315 = vmatprep.subr.mxu0 0.0
    %316 = vmatpush1.xpose.msra.mxu0 0.0
    %317 = vmatprep.subr.mxu0 0.0
    %318 = vmatpush1.xpose.msra.mxu0 0.0
    %319 = vmatprep.mubr.f32.mxu0 0.0
    %v320 = vand.u32 %v57, 4294901760
    %321 = vmatmul.mubr.f32.gmra.mrb[0].mxu0 %v320
    %v322 = vpop.f32.mrb[0].mxu0
    %v323 = vadd.f32 %v182, %v322
    %v324 = vpop.f32.mrb[0].mxu0
    %325 = vmatprep.mubr.f32.mxu0 0.0
    %v326 = vand.u32 %v60, 4294901760
    %327 = vmatmul.mubr.f32.gmra.mrb[0].mxu0 %v326
    %v328 = vpop.f32.mrb[0].mxu0
    %v329 = vadd.f32 %v192, %v328
    %v330 = vpop.f32.mrb[0].mxu0
    %331 = vdwg.mxu0
    %332 = vmatprep.subr.mxu0 0.0
    %v333 = vand.u32 %v63, 4294901760
    %v334 = vsub.f32 %v63, %v333
    %335 = vmatpush1.xpose.msra.mxu0 %v334
    %336 = vmatprep.subr.mxu0 0.0
    %v337 = vand.u32 %v66, 4294901760
    %v338 = vsub.f32 %v66, %v337
    %339 = vmatpush1.xpose.msra.mxu0 %v338
    %340 = vmatprep.subr.mxu0 0.0
    %v341 = vand.u32 %v69, 4294901760
    %v342 = vsub.f32 %v69, %v341
    %343 = vmatpush1.xpose.msra.mxu0 %v342
    %344 = vmatprep.subr.mxu0 0.0
    %v345 = vand.u32 %v72, 4294901760
    %v346 = vsub.f32 %v72, %v345
    %347 = vmatpush1.xpose.msra.mxu0 %v346
    %348 = vmatprep.subr.mxu0 0.0
    %v349 = vand.u32 %v75, 4294901760
    %v350 = vsub.f32 %v75, %v349
    %351 = vmatpush1.xpose.msra.mxu0 %v350
    %352 = vmatprep.subr.mxu0 0.0
    %v353 = vand.u32 %v78, 4294901760
    %v354 = vsub.f32 %v78, %v353
    %355 = vmatpush1.xpose.msra.mxu0 %v354
    %356 = vmatprep.subr.mxu0 0.0
    %v357 = vand.u32 %v81, 4294901760
    %v358 = vsub.f32 %v81, %v357
    %359 = vmatpush1.xpose.msra.mxu0 %v358
    %360 = vmatprep.subr.mxu0 0.0
    %v361 = vand.u32 %v84, 4294901760
    %v362 = vsub.f32 %v84, %v361
    %363 = vmatpush1.xpose.msra.mxu0 %v362
    %364 = vmatprep.subr.mxu0 0.0
    %v365 = vand.u32 %v87, 4294901760
    %v366 = vsub.f32 %v87, %v365
    %367 = vmatpush1.xpose.msra.mxu0 %v366
    %368 = vmatprep.subr.mxu0 0.0
    %v369 = vand.u32 %v90, 4294901760
    %v370 = vsub.f32 %v90, %v369
    %371 = vmatpush1.xpose.msra.mxu0 %v370
    %372 = vmatprep.subr.mxu0 0.0
    %v373 = vand.u32 %v93, 4294901760
    %v374 = vsub.f32 %v93, %v373
    %375 = vmatpush1.xpose.msra.mxu0 %v374
    %376 = vmatprep.subr.mxu0 0.0
    %v377 = vand.u32 %v96, 4294901760
    %v378 = vsub.f32 %v96, %v377
    %379 = vmatpush1.xpose.msra.mxu0 %v378
    %380 = vmatprep.subr.mxu0 0.0
    %381 = vmatpush1.xpose.msra.mxu0 0.0
    %382 = vmatprep.subr.mxu0 0.0
    %383 = vmatpush1.xpose.msra.mxu0 0.0
    %384 = vmatprep.subr.mxu0 0.0
    %385 = vmatpush1.xpose.msra.mxu0 0.0
    %386 = vmatprep.subr.mxu0 0.0
    %387 = vmatpush1.xpose.msra.mxu0 0.0
    %388 = vmatprep.subr.mxu0 0.0
    %389 = vmatpush1.xpose.msra.mxu0 0.0
    %390 = vmatprep.subr.mxu0 0.0
    %391 = vmatpush1.xpose.msra.mxu0 0.0
    %392 = vmatprep.subr.mxu0 0.0
    %393 = vmatpush1.xpose.msra.mxu0 0.0
    %394 = vmatprep.subr.mxu0 0.0
    %395 = vmatpush1.xpose.msra.mxu0 0.0
    %396 = vmatprep.subr.mxu0 0.0
    %397 = vmatpush1.xpose.msra.mxu0 0.0
    %398 = vmatprep.subr.mxu0 0.0
    %399 = vmatpush1.xpose.msra.mxu0 0.0
    %400 = vmatprep.subr.mxu0 0.0
    %401 = vmatpush1.xpose.msra.mxu0 0.0
    %402 = vmatprep.subr.mxu0 0.0
    %403 = vmatpush1.xpose.msra.mxu0 0.0
    %404 = vmatprep.subr.mxu0 0.0
    %405 = vmatpush1.xpose.msra.mxu0 0.0
    %406 = vmatprep.subr.mxu0 0.0
    %407 = vmatpush1.xpose.msra.mxu0 0.0
    %408 = vmatprep.subr.mxu0 0.0
    %409 = vmatpush1.xpose.msra.mxu0 0.0
    %410 = vmatprep.subr.mxu0 0.0
    %411 = vmatpush1.xpose.msra.mxu0 0.0
    %412 = vmatprep.subr.mxu0 0.0
    %413 = vmatpush1.xpose.msra.mxu0 0.0
    %414 = vmatprep.subr.mxu0 0.0
    %415 = vmatpush1.xpose.msra.mxu0 0.0
    %416 = vmatprep.subr.mxu0 0.0
    %417 = vmatpush1.xpose.msra.mxu0 0.0
    %418 = vmatprep.subr.mxu0 0.0
    %419 = vmatpush1.xpose.msra.mxu0 0.0
    %420 = vmatprep.mubr.f32.mxu0 0.0
    %v421 = vand.u32 %v57, 4294901760
    %v422 = vsub.f32 %v57, %v421
    %423 = vmatmul.mubr.f32.gmra.mrb[0].mxu0 %v422
    %v424 = vpop.f32.mrb[0].mxu0
    %v425 = vadd.f32 %v323, %v424
    %v426 = vpop.f32.mrb[0].mxu0
    %427 = vmatprep.mubr.f32.mxu0 0.0
    %v428 = vand.u32 %v60, 4294901760
    %v429 = vsub.f32 %v60, %v428
    %430 = vmatmul.mubr.f32.gmra.mrb[0].mxu0 %v429
    %v431 = vpop.f32.mrb[0].mxu0
    %v432 = vadd.f32 %v329, %v431
    %v433 = vpop.f32.mrb[0].mxu0
    %434 = vdwg.mxu0
    %435 = vmatprep.subr.mxu0 0.0
    %v436 = vand.u32 %v63, 4294901760
    %437 = vmatpush1.xpose.msra.mxu0 %v436
    %438 = vmatprep.subr.mxu0 0.0
    %v439 = vand.u32 %v66, 4294901760
    %440 = vmatpush1.xpose.msra.mxu0 %v439
    %441 = vmatprep.subr.mxu0 0.0
    %v442 = vand.u32 %v69, 4294901760
    %443 = vmatpush1.xpose.msra.mxu0 %v442
    %444 = vmatprep.subr.mxu0 0.0
    %v445 = vand.u32 %v72, 4294901760
    %446 = vmatpush1.xpose.msra.mxu0 %v445
    %447 = vmatprep.subr.mxu0 0.0
    %v448 = vand.u32 %v75, 4294901760
    %449 = vmatpush1.xpose.msra.mxu0 %v448
    %450 = vmatprep.subr.mxu0 0.0
    %v451 = vand.u32 %v78, 4294901760
    %452 = vmatpush1.xpose.msra.mxu0 %v451
    %453 = vmatprep.subr.mxu0 0.0
    %v454 = vand.u32 %v81, 4294901760
    %455 = vmatpush1.xpose.msra.mxu0 %v454
    %456 = vmatprep.subr.mxu0 0.0
    %v457 = vand.u32 %v84, 4294901760
    %458 = vmatpush1.xpose.msra.mxu0 %v457
    %459 = vmatprep.subr.mxu0 0.0
    %v460 = vand.u32 %v87, 4294901760
    %461 = vmatpush1.xpose.msra.mxu0 %v460
    %462 = vmatprep.subr.mxu0 0.0
    %v463 = vand.u32 %v90, 4294901760
    %464 = vmatpush1.xpose.msra.mxu0 %v463
    %465 = vmatprep.subr.mxu0 0.0
    %v466 = vand.u32 %v93, 4294901760
    %467 = vmatpush1.xpose.msra.mxu0 %v466
    %468 = vmatprep.subr.mxu0 0.0
    %v469 = vand.u32 %v96, 4294901760
    %470 = vmatpush1.xpose.msra.mxu0 %v469
    %471 = vmatprep.subr.mxu0 0.0
    %472 = vmatpush1.xpose.msra.mxu0 0.0
    %473 = vmatprep.subr.mxu0 0.0
    %474 = vmatpush1.xpose.msra.mxu0 0.0
    %475 = vmatprep.subr.mxu0 0.0
    %476 = vmatpush1.xpose.msra.mxu0 0.0
    %477 = vmatprep.subr.mxu0 0.0
    %478 = vmatpush1.xpose.msra.mxu0 0.0
    %479 = vmatprep.subr.mxu0 0.0
    %480 = vmatpush1.xpose.msra.mxu0 0.0
    %481 = vmatprep.subr.mxu0 0.0
    %482 = vmatpush1.xpose.msra.mxu0 0.0
    %483 = vmatprep.subr.mxu0 0.0
    %484 = vmatpush1.xpose.msra.mxu0 0.0
    %485 = vmatprep.subr.mxu0 0.0
    %486 = vmatpush1.xpose.msra.mxu0 0.0
    %487 = vmatprep.subr.mxu0 0.0
    %488 = vmatpush1.xpose.msra.mxu0 0.0
    %489 = vmatprep.subr.mxu0 0.0
    %490 = vmatpush1.xpose.msra.mxu0 0.0
    %491 = vmatprep.subr.mxu0 0.0
    %492 = vmatpush1.xpose.msra.mxu0 0.0
    %493 = vmatprep.subr.mxu0 0.0
    %494 = vmatpush1.xpose.msra.mxu0 0.0
    %495 = vmatprep.subr.mxu0 0.0
    %496 = vmatpush1.xpose.msra.mxu0 0.0
    %497 = vmatprep.subr.mxu0 0.0
    %498 = vmatpush1.xpose.msra.mxu0 0.0
    %499 = vmatprep.subr.mxu0 0.0
    %500 = vmatpush1.xpose.msra.mxu0 0.0
    %501 = vmatprep.subr.mxu0 0.0
    %502 = vmatpush1.xpose.msra.mxu0 0.0
    %503 = vmatprep.subr.mxu0 0.0
    %504 = vmatpush1.xpose.msra.mxu0 0.0
    %505 = vmatprep.subr.mxu0 0.0
    %506 = vmatpush1.xpose.msra.mxu0 0.0
    %507 = vmatprep.subr.mxu0 0.0
    %508 = vmatpush1.xpose.msra.mxu0 0.0
    %509 = vmatprep.subr.mxu0 0.0
    %510 = vmatpush1.xpose.msra.mxu0 0.0
    %511 = vmatprep.mubr.f32.mxu0 0.0
    %v512 = vand.u32 %v57, 4294901760
    %v513 = vsub.f32 %v57, %v512
    %v514 = vand.u32 %v513, 4294901760
    %515 = vmatmul.mubr.f32.gmra.mrb[0].mxu0 %v514
    %v516 = vpop.f32.mrb[0].mxu0
    %v517 = vadd.f32 %v425, %v516
    %v518 = vpop.f32.mrb[0].mxu0
    %519 = vmatprep.mubr.f32.mxu0 0.0
    %v520 = vand.u32 %v60, 4294901760
    %v521 = vsub.f32 %v60, %v520
    %v522 = vand.u32 %v521, 4294901760
    %523 = vmatmul.mubr.f32.gmra.mrb[0].mxu0 %v522
    %v524 = vpop.f32.mrb[0].mxu0
    %v525 = vadd.f32 %v432, %v524
    %v526 = vpop.f32.mrb[0].mxu0
    %527 = vdwg.mxu0
    %528 = vmatprep.subr.mxu0 0.0
    %v529 = vand.u32 %v63, 4294901760
    %v530 = vsub.f32 %v63, %v529
    %v531 = vand.u32 %v530, 4294901760
    %532 = vmatpush1.xpose.msra.mxu0 %v531
    %533 = vmatprep.subr.mxu0 0.0
    %v534 = vand.u32 %v66, 4294901760
    %v535 = vsub.f32 %v66, %v534
    %v536 = vand.u32 %v535, 4294901760
    %537 = vmatpush1.xpose.msra.mxu0 %v536
    %538 = vmatprep.subr.mxu0 0.0
    %v539 = vand.u32 %v69, 4294901760
    %v540 = vsub.f32 %v69, %v539
    %v541 = vand.u32 %v540, 4294901760
    %542 = vmatpush1.xpose.msra.mxu0 %v541
    %543 = vmatprep.subr.mxu0 0.0
    %v544 = vand.u32 %v72, 4294901760
    %v545 = vsub.f32 %v72, %v544
    %v546 = vand.u32 %v545, 4294901760
    %547 = vmatpush1.xpose.msra.mxu0 %v546
    %548 = vmatprep.subr.mxu0 0.0
    %v549 = vand.u32 %v75, 4294901760
    %v550 = vsub.f32 %v75, %v549
    %v551 = vand.u32 %v550, 4294901760
    %552 = vmatpush1.xpose.msra.mxu0 %v551
    %553 = vmatprep.subr.mxu0 0.0
    %v554 = vand.u32 %v78, 4294901760
    %v555 = vsub.f32 %v78, %v554
    %v556 = vand.u32 %v555, 4294901760
    %557 = vmatpush1.xpose.msra.mxu0 %v556
    %558 = vmatprep.subr.mxu0 0.0
    %v559 = vand.u32 %v81, 4294901760
    %v560 = vsub.f32 %v81, %v559
    %v561 = vand.u32 %v560, 4294901760
    %562 = vmatpush1.xpose.msra.mxu0 %v561
    %563 = vmatprep.subr.mxu0 0.0
    %v564 = vand.u32 %v84, 4294901760
    %v565 = vsub.f32 %v84, %v564
    %v566 = vand.u32 %v565, 4294901760
    %567 = vmatpush1.xpose.msra.mxu0 %v566
    %568 = vmatprep.subr.mxu0 0.0
    %v569 = vand.u32 %v87, 4294901760
    %v570 = vsub.f32 %v87, %v569
    %v571 = vand.u32 %v570, 4294901760
    %572 = vmatpush1.xpose.msra.mxu0 %v571
    %573 = vmatprep.subr.mxu0 0.0
    %v574 = vand.u32 %v90, 4294901760
    %v575 = vsub.f32 %v90, %v574
    %v576 = vand.u32 %v575, 4294901760
    %577 = vmatpush1.xpose.msra.mxu0 %v576
    %578 = vmatprep.subr.mxu0 0.0
    %v579 = vand.u32 %v93, 4294901760
    %v580 = vsub.f32 %v93, %v579
    %v581 = vand.u32 %v580, 4294901760
    %582 = vmatpush1.xpose.msra.mxu0 %v581
    %583 = vmatprep.subr.mxu0 0.0
    %v584 = vand.u32 %v96, 4294901760
    %v585 = vsub.f32 %v96, %v584
    %v586 = vand.u32 %v585, 4294901760
    %587 = vmatpush1.xpose.msra.mxu0 %v586
    %588 = vmatprep.subr.mxu0 0.0
    %589 = vmatpush1.xpose.msra.mxu0 0.0
    %590 = vmatprep.subr.mxu0 0.0
    %591 = vmatpush1.xpose.msra.mxu0 0.0
    %592 = vmatprep.subr.mxu0 0.0
    %593 = vmatpush1.xpose.msra.mxu0 0.0
    %594 = vmatprep.subr.mxu0 0.0
    %595 = vmatpush1.xpose.msra.mxu0 0.0
    %596 = vmatprep.subr.mxu0 0.0
    %597 = vmatpush1.xpose.msra.mxu0 0.0
    %598 = vmatprep.subr.mxu0 0.0
    %599 = vmatpush1.xpose.msra.mxu0 0.0
    %600 = vmatprep.subr.mxu0 0.0
    %601 = vmatpush1.xpose.msra.mxu0 0.0
    %602 = vmatprep.subr.mxu0 0.0
    %603 = vmatpush1.xpose.msra.mxu0 0.0
    %604 = vmatprep.subr.mxu0 0.0
    %605 = vmatpush1.xpose.msra.mxu0 0.0
    %606 = vmatprep.subr.mxu0 0.0
    %607 = vmatpush1.xpose.msra.mxu0 0.0
    %608 = vmatprep.subr.mxu0 0.0
    %609 = vmatpush1.xpose.msra.mxu0 0.0
    %610 = vmatprep.subr.mxu0 0.0
    %611 = vmatpush1.xpose.msra.mxu0 0.0
    %612 = vmatprep.subr.mxu0 0.0
    %613 = vmatpush1.xpose.msra.mxu0 0.0
    %614 = vmatprep.subr.mxu0 0.0
    %615 = vmatpush1.xpose.msra.mxu0 0.0
    %616 = vmatprep.subr.mxu0 0.0
    %617 = vmatpush1.xpose.msra.mxu0 0.0
    %618 = vmatprep.subr.mxu0 0.0
    %619 = vmatpush1.xpose.msra.mxu0 0.0
    %620 = vmatprep.subr.mxu0 0.0
    %621 = vmatpush1.xpose.msra.mxu0 0.0
    %622 = vmatprep.subr.mxu0 0.0
    %623 = vmatpush1.xpose.msra.mxu0 0.0
    %624 = vmatprep.subr.mxu0 0.0
    %625 = vmatpush1.xpose.msra.mxu0 0.0
    %626 = vmatprep.subr.mxu0 0.0
    %627 = vmatpush1.xpose.msra.mxu0 0.0
    %628 = vmatprep.mubr.f32.mxu0 0.0
    %v629 = vand.u32 %v57, 4294901760
    %630 = vmatmul.mubr.f32.gmra.mrb[0].mxu0 %v629
    %v631 = vpop.f32.mrb[0].mxu0
    %v632 = vadd.f32 %v517, %v631
    %v633 = vpop.f32.mrb[0].mxu0
    %634 = vmatprep.mubr.f32.mxu0 0.0
    %v635 = vand.u32 %v60, 4294901760
    %636 = vmatmul.mubr.f32.gmra.mrb[0].mxu0 %v635
    %v637 = vpop.f32.mrb[0].mxu0
    %v638 = vadd.f32 %v525, %v637
    %v639 = vpop.f32.mrb[0].mxu0
    %640 = vdwg.mxu0
    %641 = vmatprep.subr.mxu0 0.0
    %v642 = vand.u32 %v63, 4294901760
    %643 = vmatpush1.xpose.msra.mxu0 %v642
    %644 = vmatprep.subr.mxu0 0.0
    %v645 = vand.u32 %v66, 4294901760
    %646 = vmatpush1.xpose.msra.mxu0 %v645
    %647 = vmatprep.subr.mxu0 0.0
    %v648 = vand.u32 %v69, 4294901760
    %649 = vmatpush1.xpose.msra.mxu0 %v648
    %650 = vmatprep.subr.mxu0 0.0
    %v651 = vand.u32 %v72, 4294901760
    %652 = vmatpush1.xpose.msra.mxu0 %v651
    %653 = vmatprep.subr.mxu0 0.0
    %v654 = vand.u32 %v75, 4294901760
    %655 = vmatpush1.xpose.msra.mxu0 %v654
    %656 = vmatprep.subr.mxu0 0.0
    %v657 = vand.u32 %v78, 4294901760
    %658 = vmatpush1.xpose.msra.mxu0 %v657
    %659 = vmatprep.subr.mxu0 0.0
    %v660 = vand.u32 %v81, 4294901760
    %661 = vmatpush1.xpose.msra.mxu0 %v660
    %662 = vmatprep.subr.mxu0 0.0
    %v663 = vand.u32 %v84, 4294901760
    %664 = vmatpush1.xpose.msra.mxu0 %v663
    %665 = vmatprep.subr.mxu0 0.0
    %v666 = vand.u32 %v87, 4294901760
    %667 = vmatpush1.xpose.msra.mxu0 %v666
    %668 = vmatprep.subr.mxu0 0.0
    %v669 = vand.u32 %v90, 4294901760
    %670 = vmatpush1.xpose.msra.mxu0 %v669
    %671 = vmatprep.subr.mxu0 0.0
    %v672 = vand.u32 %v93, 4294901760
    %673 = vmatpush1.xpose.msra.mxu0 %v672
    %674 = vmatprep.subr.mxu0 0.0
    %v675 = vand.u32 %v96, 4294901760
    %676 = vmatpush1.xpose.msra.mxu0 %v675
    %677 = vmatprep.subr.mxu0 0.0
    %678 = vmatpush1.xpose.msra.mxu0 0.0
    %679 = vmatprep.subr.mxu0 0.0
    %680 = vmatpush1.xpose.msra.mxu0 0.0
    %681 = vmatprep.subr.mxu0 0.0
    %682 = vmatpush1.xpose.msra.mxu0 0.0
    %683 = vmatprep.subr.mxu0 0.0
    %684 = vmatpush1.xpose.msra.mxu0 0.0
    %685 = vmatprep.subr.mxu0 0.0
    %686 = vmatpush1.xpose.msra.mxu0 0.0
    %687 = vmatprep.subr.mxu0 0.0
    %688 = vmatpush1.xpose.msra.mxu0 0.0
    %689 = vmatprep.subr.mxu0 0.0
    %690 = vmatpush1.xpose.msra.mxu0 0.0
    %691 = vmatprep.subr.mxu0 0.0
    %692 = vmatpush1.xpose.msra.mxu0 0.0
    %693 = vmatprep.subr.mxu0 0.0
    %694 = vmatpush1.xpose.msra.mxu0 0.0
    %695 = vmatprep.subr.mxu0 0.0
    %696 = vmatpush1.xpose.msra.mxu0 0.0
    %697 = vmatprep.subr.mxu0 0.0
    %698 = vmatpush1.xpose.msra.mxu0 0.0
    %699 = vmatprep.subr.mxu0 0.0
    %700 = vmatpush1.xpose.msra.mxu0 0.0
    %701 = vmatprep.subr.mxu0 0.0
    %702 = vmatpush1.xpose.msra.mxu0 0.0
    %703 = vmatprep.subr.mxu0 0.0
    %704 = vmatpush1.xpose.msra.mxu0 0.0
    %705 = vmatprep.subr.mxu0 0.0
    %706 = vmatpush1.xpose.msra.mxu0 0.0
    %707 = vmatprep.subr.mxu0 0.0
    %708 = vmatpush1.xpose.msra.mxu0 0.0
    %709 = vmatprep.subr.mxu0 0.0
    %710 = vmatpush1.xpose.msra.mxu0 0.0
    %711 = vmatprep.subr.mxu0 0.0
    %712 = vmatpush1.xpose.msra.mxu0 0.0
    %713 = vmatprep.subr.mxu0 0.0
    %714 = vmatpush1.xpose.msra.mxu0 0.0
    %715 = vmatprep.subr.mxu0 0.0
    %716 = vmatpush1.xpose.msra.mxu0 0.0
    %717 = vmatprep.mubr.f32.mxu0 0.0
    %v718 = vand.u32 %v57, 4294901760
    %719 = vmatmul.mubr.f32.gmra.mrb[0].mxu0 %v718
    %v720 = vpop.f32.mrb[0].mxu0
    %v721 = vadd.f32 %v632, %v720
    %v722 = vpop.f32.mrb[0].mxu0
    %723 = vmatprep.mubr.f32.mxu0 0.0
    %v724 = vand.u32 %v60, 4294901760
    %725 = vmatmul.mubr.f32.gmra.mrb[0].mxu0 %v724
    %v726 = vpop.f32.mrb[0].mxu0
    %v727 = vadd.f32 %v638, %v726
    %v728 = vpop.f32.mrb[0].mxu0
    %729 = vdwg.mxu0
    %v731 = vsel %vm55, %v29, 0
    %v734 = vsel %vm55, %v30, 0
    %v737 = vsel %vm55, %v43, 0
    %v740 = vsel %vm55, %v44, 0
    %v743 = vsel %vm55, %v45, 0
    %v746 = vsel %vm55, %v46, 0
    %v749 = vsel %vm55, %v47, 0
    %v752 = vsel %vm55, %v48, 0
    %v755 = vsel %vm55, %v49, 0
    %v758 = vsel %vm55, %v50, 0
    %v761 = vsel %vm55, %v51, 0
    %v764 = vsel %vm55, %v52, 0
    %v767 = vsel %vm55, %v53, 0
    %v770 = vsel %vm55, %v54, 0
    %772 = vmatprep.subr.mxu0 0.0
    %v773 = vand.u32 %v737, 4294901760
    %774 = vmatpush1.xpose.msra.mxu0 %v773
    %775 = vmatprep.subr.mxu0 0.0
    %v776 = vand.u32 %v740, 4294901760
    %777 = vmatpush1.xpose.msra.mxu0 %v776
    %778 = vmatprep.subr.mxu0 0.0
    %v779 = vand.u32 %v743, 4294901760
    %780 = vmatpush1.xpose.msra.mxu0 %v779
    %781 = vmatprep.subr.mxu0 0.0
    %v782 = vand.u32 %v746, 4294901760
    %783 = vmatpush1.xpose.msra.mxu0 %v782
    %784 = vmatprep.subr.mxu0 0.0
    %v785 = vand.u32 %v749, 4294901760
    %786 = vmatpush1.xpose.msra.mxu0 %v785
    %787 = vmatprep.subr.mxu0 0.0
    %v788 = vand.u32 %v752, 4294901760
    %789 = vmatpush1.xpose.msra.mxu0 %v788
    %790 = vmatprep.subr.mxu0 0.0
    %v791 = vand.u32 %v755, 4294901760
    %792 = vmatpush1.xpose.msra.mxu0 %v791
    %793 = vmatprep.subr.mxu0 0.0
    %v794 = vand.u32 %v758, 4294901760
    %795 = vmatpush1.xpose.msra.mxu0 %v794
    %796 = vmatprep.subr.mxu0 0.0
    %v797 = vand.u32 %v761, 4294901760
    %798 = vmatpush1.xpose.msra.mxu0 %v797
    %799 = vmatprep.subr.mxu0 0.0
    %v800 = vand.u32 %v764, 4294901760
    %801 = vmatpush1.xpose.msra.mxu0 %v800
    %802 = vmatprep.subr.mxu0 0.0
    %v803 = vand.u32 %v767, 4294901760
    %804 = vmatpush1.xpose.msra.mxu0 %v803
    %805 = vmatprep.subr.mxu0 0.0
    %v806 = vand.u32 %v770, 4294901760
    %807 = vmatpush1.xpose.msra.mxu0 %v806
    %808 = vmatprep.subr.mxu0 0.0
    %809 = vmatpush1.xpose.msra.mxu0 0.0
    %810 = vmatprep.subr.mxu0 0.0
    %811 = vmatpush1.xpose.msra.mxu0 0.0
    %812 = vmatprep.subr.mxu0 0.0
    %813 = vmatpush1.xpose.msra.mxu0 0.0
    %814 = vmatprep.subr.mxu0 0.0
    %815 = vmatpush1.xpose.msra.mxu0 0.0
    %816 = vmatprep.subr.mxu0 0.0
    %817 = vmatpush1.xpose.msra.mxu0 0.0
    %818 = vmatprep.subr.mxu0 0.0
    %819 = vmatpush1.xpose.msra.mxu0 0.0
    %820 = vmatprep.subr.mxu0 0.0
    %821 = vmatpush1.xpose.msra.mxu0 0.0
    %822 = vmatprep.subr.mxu0 0.0
    %823 = vmatpush1.xpose.msra.mxu0 0.0
    %824 = vmatprep.subr.mxu0 0.0
    %825 = vmatpush1.xpose.msra.mxu0 0.0
    %826 = vmatprep.subr.mxu0 0.0
    %827 = vmatpush1.xpose.msra.mxu0 0.0
    %828 = vmatprep.subr.mxu0 0.0
    %829 = vmatpush1.xpose.msra.mxu0 0.0
    %830 = vmatprep.subr.mxu0 0.0
    %831 = vmatpush1.xpose.msra.mxu0 0.0
    %832 = vmatprep.subr.mxu0 0.0
    %833 = vmatpush1.xpose.msra.mxu0 0.0
    %834 = vmatprep.subr.mxu0 0.0
    %835 = vmatpush1.xpose.msra.mxu0 0.0
    %836 = vmatprep.subr.mxu0 0.0
    %837 = vmatpush1.xpose.msra.mxu0 0.0
    %838 = vmatprep.subr.mxu0 0.0
    %839 = vmatpush1.xpose.msra.mxu0 0.0
    %840 = vmatprep.subr.mxu0 0.0
    %841 = vmatpush1.xpose.msra.mxu0 0.0
    %842 = vmatprep.subr.mxu0 0.0
    %843 = vmatpush1.xpose.msra.mxu0 0.0
    %844 = vmatprep.subr.mxu0 0.0
    %845 = vmatpush1.xpose.msra.mxu0 0.0
    %846 = vmatprep.subr.mxu0 0.0
    %847 = vmatpush1.xpose.msra.mxu0 0.0
    %848 = vmatprep.mubr.f32.mxu0 0.0
    %v849 = vand.u32 %v731, 4294901760
    %v850 = vsub.f32 %v731, %v849
    %v851 = vand.u32 %v850, 4294901760
    %v852 = vsub.f32 %v850, %v851
    %v853 = vand.u32 %v852, 4294901760
    %854 = vmatmul.mubr.f32.gmra.mrb[0].mxu0 %v853
    %v855 = vpop.f32.mrb[0].mxu0
    %v856 = vadd.f32 0.0, %v855
    %v857 = vpop.f32.mrb[0].mxu0
    %858 = vmatprep.mubr.f32.mxu0 0.0
    %v859 = vand.u32 %v734, 4294901760
    %v860 = vsub.f32 %v734, %v859
    %v861 = vand.u32 %v860, 4294901760
    %v862 = vsub.f32 %v860, %v861
    %v863 = vand.u32 %v862, 4294901760
    %864 = vmatmul.mubr.f32.gmra.mrb[0].mxu0 %v863
    %v865 = vpop.f32.mrb[0].mxu0
    %v866 = vadd.f32 0.0, %v865
    %v867 = vpop.f32.mrb[0].mxu0
    %868 = vdwg.mxu0
    %869 = vmatprep.subr.mxu0 0.0
    %v870 = vand.u32 %v737, 4294901760
    %v871 = vsub.f32 %v737, %v870
    %v872 = vand.u32 %v871, 4294901760
    %v873 = vsub.f32 %v871, %v872
    %v874 = vand.u32 %v873, 4294901760
    %875 = vmatpush1.xpose.msra.mxu0 %v874
    %876 = vmatprep.subr.mxu0 0.0
    %v877 = vand.u32 %v740, 4294901760
    %v878 = vsub.f32 %v740, %v877
    %v879 = vand.u32 %v878, 4294901760
    %v880 = vsub.f32 %v878, %v879
    %v881 = vand.u32 %v880, 4294901760
    %882 = vmatpush1.xpose.msra.mxu0 %v881
    %883 = vmatprep.subr.mxu0 0.0
    %v884 = vand.u32 %v743, 4294901760
    %v885 = vsub.f32 %v743, %v884
    %v886 = vand.u32 %v885, 4294901760
    %v887 = vsub.f32 %v885, %v886
    %v888 = vand.u32 %v887, 4294901760
    %889 = vmatpush1.xpose.msra.mxu0 %v888
    %890 = vmatprep.subr.mxu0 0.0
    %v891 = vand.u32 %v746, 4294901760
    %v892 = vsub.f32 %v746, %v891
    %v893 = vand.u32 %v892, 4294901760
    %v894 = vsub.f32 %v892, %v893
    %v895 = vand.u32 %v894, 4294901760
    %896 = vmatpush1.xpose.msra.mxu0 %v895
    %897 = vmatprep.subr.mxu0 0.0
    %v898 = vand.u32 %v749, 4294901760
    %v899 = vsub.f32 %v749, %v898
    %v900 = vand.u32 %v899, 4294901760
    %v901 = vsub.f32 %v899, %v900
    %v902 = vand.u32 %v901, 4294901760
    %903 = vmatpush1.xpose.msra.mxu0 %v902
    %904 = vmatprep.subr.mxu0 0.0
    %v905 = vand.u32 %v752, 4294901760
    %v906 = vsub.f32 %v752, %v905
    %v907 = vand.u32 %v906, 4294901760
    %v908 = vsub.f32 %v906, %v907
    %v909 = vand.u32 %v908, 4294901760
    %910 = vmatpush1.xpose.msra.mxu0 %v909
    %911 = vmatprep.subr.mxu0 0.0
    %v912 = vand.u32 %v755, 4294901760
    %v913 = vsub.f32 %v755, %v912
    %v914 = vand.u32 %v913, 4294901760
    %v915 = vsub.f32 %v913, %v914
    %v916 = vand.u32 %v915, 4294901760
    %917 = vmatpush1.xpose.msra.mxu0 %v916
    %918 = vmatprep.subr.mxu0 0.0
    %v919 = vand.u32 %v758, 4294901760
    %v920 = vsub.f32 %v758, %v919
    %v921 = vand.u32 %v920, 4294901760
    %v922 = vsub.f32 %v920, %v921
    %v923 = vand.u32 %v922, 4294901760
    %924 = vmatpush1.xpose.msra.mxu0 %v923
    %925 = vmatprep.subr.mxu0 0.0
    %v926 = vand.u32 %v761, 4294901760
    %v927 = vsub.f32 %v761, %v926
    %v928 = vand.u32 %v927, 4294901760
    %v929 = vsub.f32 %v927, %v928
    %v930 = vand.u32 %v929, 4294901760
    %931 = vmatpush1.xpose.msra.mxu0 %v930
    %932 = vmatprep.subr.mxu0 0.0
    %v933 = vand.u32 %v764, 4294901760
    %v934 = vsub.f32 %v764, %v933
    %v935 = vand.u32 %v934, 4294901760
    %v936 = vsub.f32 %v934, %v935
    %v937 = vand.u32 %v936, 4294901760
    %938 = vmatpush1.xpose.msra.mxu0 %v937
    %939 = vmatprep.subr.mxu0 0.0
    %v940 = vand.u32 %v767, 4294901760
    %v941 = vsub.f32 %v767, %v940
    %v942 = vand.u32 %v941, 4294901760
    %v943 = vsub.f32 %v941, %v942
    %v944 = vand.u32 %v943, 4294901760
    %945 = vmatpush1.xpose.msra.mxu0 %v944
    %946 = vmatprep.subr.mxu0 0.0
    %v947 = vand.u32 %v770, 4294901760
    %v948 = vsub.f32 %v770, %v947
    %v949 = vand.u32 %v948, 4294901760
    %v950 = vsub.f32 %v948, %v949
    %v951 = vand.u32 %v950, 4294901760
    %952 = vmatpush1.xpose.msra.mxu0 %v951
    %953 = vmatprep.subr.mxu0 0.0
    %954 = vmatpush1.xpose.msra.mxu0 0.0
    %955 = vmatprep.subr.mxu0 0.0
    %956 = vmatpush1.xpose.msra.mxu0 0.0
    %957 = vmatprep.subr.mxu0 0.0
    %958 = vmatpush1.xpose.msra.mxu0 0.0
    %959 = vmatprep.subr.mxu0 0.0
    %960 = vmatpush1.xpose.msra.mxu0 0.0
    %961 = vmatprep.subr.mxu0 0.0
    %962 = vmatpush1.xpose.msra.mxu0 0.0
    %963 = vmatprep.subr.mxu0 0.0
    %964 = vmatpush1.xpose.msra.mxu0 0.0
    %965 = vmatprep.subr.mxu0 0.0
    %966 = vmatpush1.xpose.msra.mxu0 0.0
    %967 = vmatprep.subr.mxu0 0.0
    %968 = vmatpush1.xpose.msra.mxu0 0.0
    %969 = vmatprep.subr.mxu0 0.0
    %970 = vmatpush1.xpose.msra.mxu0 0.0
    %971 = vmatprep.subr.mxu0 0.0
    %972 = vmatpush1.xpose.msra.mxu0 0.0
    %973 = vmatprep.subr.mxu0 0.0
    %974 = vmatpush1.xpose.msra.mxu0 0.0
    %975 = vmatprep.subr.mxu0 0.0
    %976 = vmatpush1.xpose.msra.mxu0 0.0
    %977 = vmatprep.subr.mxu0 0.0
    %978 = vmatpush1.xpose.msra.mxu0 0.0
    %979 = vmatprep.subr.mxu0 0.0
    %980 = vmatpush1.xpose.msra.mxu0 0.0
    %981 = vmatprep.subr.mxu0 0.0
    %982 = vmatpush1.xpose.msra.mxu0 0.0
    %983 = vmatprep.subr.mxu0 0.0
    %984 = vmatpush1.xpose.msra.mxu0 0.0
    %985 = vmatprep.subr.mxu0 0.0
    %986 = vmatpush1.xpose.msra.mxu0 0.0
    %987 = vmatprep.subr.mxu0 0.0
    %988 = vmatpush1.xpose.msra.mxu0 0.0
    %989 = vmatprep.subr.mxu0 0.0
    %990 = vmatpush1.xpose.msra.mxu0 0.0
    %991 = vmatprep.subr.mxu0 0.0
    %992 = vmatpush1.xpose.msra.mxu0 0.0
    %993 = vmatprep.mubr.f32.mxu0 0.0
    %v994 = vand.u32 %v731, 4294901760
    %995 = vmatmul.mubr.f32.gmra.mrb[0].mxu0 %v994
    %v996 = vpop.f32.mrb[0].mxu0
    %v997 = vadd.f32 %v856, %v996
    %v998 = vpop.f32.mrb[0].mxu0
    %999 = vmatprep.mubr.f32.mxu0 0.0
    %v1000 = vand.u32 %v734, 4294901760
    %1001 = vmatmul.mubr.f32.gmra.mrb[0].mxu0 %v1000
    %v1002 = vpop.f32.mrb[0].mxu0
    %v1003 = vadd.f32 %v866, %v1002
    %v1004 = vpop.f32.mrb[0].mxu0
    %1005 = vdwg.mxu0
    %1006 = vmatprep.subr.mxu0 0.0
    %v1007 = vand.u32 %v737, 4294901760
    %v1008 = vsub.f32 %v737, %v1007
    %1009 = vmatpush1.xpose.msra.mxu0 %v1008
    %1010 = vmatprep.subr.mxu0 0.0
    %v1011 = vand.u32 %v740, 4294901760
    %v1012 = vsub.f32 %v740, %v1011
    %1013 = vmatpush1.xpose.msra.mxu0 %v1012
    %1014 = vmatprep.subr.mxu0 0.0
    %v1015 = vand.u32 %v743, 4294901760
    %v1016 = vsub.f32 %v743, %v1015
    %1017 = vmatpush1.xpose.msra.mxu0 %v1016
    %1018 = vmatprep.subr.mxu0 0.0
    %v1019 = vand.u32 %v746, 4294901760
    %v1020 = vsub.f32 %v746, %v1019
    %1021 = vmatpush1.xpose.msra.mxu0 %v1020
    %1022 = vmatprep.subr.mxu0 0.0
    %v1023 = vand.u32 %v749, 4294901760
    %v1024 = vsub.f32 %v749, %v1023
    %1025 = vmatpush1.xpose.msra.mxu0 %v1024
    %1026 = vmatprep.subr.mxu0 0.0
    %v1027 = vand.u32 %v752, 4294901760
    %v1028 = vsub.f32 %v752, %v1027
    %1029 = vmatpush1.xpose.msra.mxu0 %v1028
    %1030 = vmatprep.subr.mxu0 0.0
    %v1031 = vand.u32 %v755, 4294901760
    %v1032 = vsub.f32 %v755, %v1031
    %1033 = vmatpush1.xpose.msra.mxu0 %v1032
    %1034 = vmatprep.subr.mxu0 0.0
    %v1035 = vand.u32 %v758, 4294901760
    %v1036 = vsub.f32 %v758, %v1035
    %1037 = vmatpush1.xpose.msra.mxu0 %v1036
    %1038 = vmatprep.subr.mxu0 0.0
    %v1039 = vand.u32 %v761, 4294901760
    %v1040 = vsub.f32 %v761, %v1039
    %1041 = vmatpush1.xpose.msra.mxu0 %v1040
    %1042 = vmatprep.subr.mxu0 0.0
    %v1043 = vand.u32 %v764, 4294901760
    %v1044 = vsub.f32 %v764, %v1043
    %1045 = vmatpush1.xpose.msra.mxu0 %v1044
    %1046 = vmatprep.subr.mxu0 0.0
    %v1047 = vand.u32 %v767, 4294901760
    %v1048 = vsub.f32 %v767, %v1047
    %1049 = vmatpush1.xpose.msra.mxu0 %v1048
    %1050 = vmatprep.subr.mxu0 0.0
    %v1051 = vand.u32 %v770, 4294901760
    %v1052 = vsub.f32 %v770, %v1051
    %1053 = vmatpush1.xpose.msra.mxu0 %v1052
    %1054 = vmatprep.subr.mxu0 0.0
    %1055 = vmatpush1.xpose.msra.mxu0 0.0
    %1056 = vmatprep.subr.mxu0 0.0
    %1057 = vmatpush1.xpose.msra.mxu0 0.0
    %1058 = vmatprep.subr.mxu0 0.0
    %1059 = vmatpush1.xpose.msra.mxu0 0.0
    %1060 = vmatprep.subr.mxu0 0.0
    %1061 = vmatpush1.xpose.msra.mxu0 0.0
    %1062 = vmatprep.subr.mxu0 0.0
    %1063 = vmatpush1.xpose.msra.mxu0 0.0
    %1064 = vmatprep.subr.mxu0 0.0
    %1065 = vmatpush1.xpose.msra.mxu0 0.0
    %1066 = vmatprep.subr.mxu0 0.0
    %1067 = vmatpush1.xpose.msra.mxu0 0.0
    %1068 = vmatprep.subr.mxu0 0.0
    %1069 = vmatpush1.xpose.msra.mxu0 0.0
    %1070 = vmatprep.subr.mxu0 0.0
    %1071 = vmatpush1.xpose.msra.mxu0 0.0
    %1072 = vmatprep.subr.mxu0 0.0
    %1073 = vmatpush1.xpose.msra.mxu0 0.0
    %1074 = vmatprep.subr.mxu0 0.0
    %1075 = vmatpush1.xpose.msra.mxu0 0.0
    %1076 = vmatprep.subr.mxu0 0.0
    %1077 = vmatpush1.xpose.msra.mxu0 0.0
    %1078 = vmatprep.subr.mxu0 0.0
    %1079 = vmatpush1.xpose.msra.mxu0 0.0
    %1080 = vmatprep.subr.mxu0 0.0
    %1081 = vmatpush1.xpose.msra.mxu0 0.0
    %1082 = vmatprep.subr.mxu0 0.0
    %1083 = vmatpush1.xpose.msra.mxu0 0.0
    %1084 = vmatprep.subr.mxu0 0.0
    %1085 = vmatpush1.xpose.msra.mxu0 0.0
    %1086 = vmatprep.subr.mxu0 0.0
    %1087 = vmatpush1.xpose.msra.mxu0 0.0
    %1088 = vmatprep.subr.mxu0 0.0
    %1089 = vmatpush1.xpose.msra.mxu0 0.0
    %1090 = vmatprep.subr.mxu0 0.0
    %1091 = vmatpush1.xpose.msra.mxu0 0.0
    %1092 = vmatprep.subr.mxu0 0.0
    %1093 = vmatpush1.xpose.msra.mxu0 0.0
    %1094 = vmatprep.mubr.f32.mxu0 0.0
    %v1095 = vand.u32 %v731, 4294901760
    %v1096 = vsub.f32 %v731, %v1095
    %1097 = vmatmul.mubr.f32.gmra.mrb[0].mxu0 %v1096
    %v1098 = vpop.f32.mrb[0].mxu0
    %v1099 = vadd.f32 %v997, %v1098
    %v1100 = vpop.f32.mrb[0].mxu0
    %1101 = vmatprep.mubr.f32.mxu0 0.0
    %v1102 = vand.u32 %v734, 4294901760
    %v1103 = vsub.f32 %v734, %v1102
    %1104 = vmatmul.mubr.f32.gmra.mrb[0].mxu0 %v1103
    %v1105 = vpop.f32.mrb[0].mxu0
    %v1106 = vadd.f32 %v1003, %v1105
    %v1107 = vpop.f32.mrb[0].mxu0
    %1108 = vdwg.mxu0
    %1109 = vmatprep.subr.mxu0 0.0
    %v1110 = vand.u32 %v737, 4294901760
    %1111 = vmatpush1.xpose.msra.mxu0 %v1110
    %1112 = vmatprep.subr.mxu0 0.0
    %v1113 = vand.u32 %v740, 4294901760
    %1114 = vmatpush1.xpose.msra.mxu0 %v1113
    %1115 = vmatprep.subr.mxu0 0.0
    %v1116 = vand.u32 %v743, 4294901760
    %1117 = vmatpush1.xpose.msra.mxu0 %v1116
    %1118 = vmatprep.subr.mxu0 0.0
    %v1119 = vand.u32 %v746, 4294901760
    %1120 = vmatpush1.xpose.msra.mxu0 %v1119
    %1121 = vmatprep.subr.mxu0 0.0
    %v1122 = vand.u32 %v749, 4294901760
    %1123 = vmatpush1.xpose.msra.mxu0 %v1122
    %1124 = vmatprep.subr.mxu0 0.0
    %v1125 = vand.u32 %v752, 4294901760
    %1126 = vmatpush1.xpose.msra.mxu0 %v1125
    %1127 = vmatprep.subr.mxu0 0.0
    %v1128 = vand.u32 %v755, 4294901760
    %1129 = vmatpush1.xpose.msra.mxu0 %v1128
    %1130 = vmatprep.subr.mxu0 0.0
    %v1131 = vand.u32 %v758, 4294901760
    %1132 = vmatpush1.xpose.msra.mxu0 %v1131
    %1133 = vmatprep.subr.mxu0 0.0
    %v1134 = vand.u32 %v761, 4294901760
    %1135 = vmatpush1.xpose.msra.mxu0 %v1134
    %1136 = vmatprep.subr.mxu0 0.0
    %v1137 = vand.u32 %v764, 4294901760
    %1138 = vmatpush1.xpose.msra.mxu0 %v1137
    %1139 = vmatprep.subr.mxu0 0.0
    %v1140 = vand.u32 %v767, 4294901760
    %1141 = vmatpush1.xpose.msra.mxu0 %v1140
    %1142 = vmatprep.subr.mxu0 0.0
    %v1143 = vand.u32 %v770, 4294901760
    %1144 = vmatpush1.xpose.msra.mxu0 %v1143
    %1145 = vmatprep.subr.mxu0 0.0
    %1146 = vmatpush1.xpose.msra.mxu0 0.0
    %1147 = vmatprep.subr.mxu0 0.0
    %1148 = vmatpush1.xpose.msra.mxu0 0.0
    %1149 = vmatprep.subr.mxu0 0.0
    %1150 = vmatpush1.xpose.msra.mxu0 0.0
    %1151 = vmatprep.subr.mxu0 0.0
    %1152 = vmatpush1.xpose.msra.mxu0 0.0
    %1153 = vmatprep.subr.mxu0 0.0
    %1154 = vmatpush1.xpose.msra.mxu0 0.0
    %1155 = vmatprep.subr.mxu0 0.0
    %1156 = vmatpush1.xpose.msra.mxu0 0.0
    %1157 = vmatprep.subr.mxu0 0.0
    %1158 = vmatpush1.xpose.msra.mxu0 0.0
    %1159 = vmatprep.subr.mxu0 0.0
    %1160 = vmatpush1.xpose.msra.mxu0 0.0
    %1161 = vmatprep.subr.mxu0 0.0
    %1162 = vmatpush1.xpose.msra.mxu0 0.0
    %1163 = vmatprep.subr.mxu0 0.0
    %1164 = vmatpush1.xpose.msra.mxu0 0.0
    %1165 = vmatprep.subr.mxu0 0.0
    %1166 = vmatpush1.xpose.msra.mxu0 0.0
    %1167 = vmatprep.subr.mxu0 0.0
    %1168 = vmatpush1.xpose.msra.mxu0 0.0
    %1169 = vmatprep.subr.mxu0 0.0
    %1170 = vmatpush1.xpose.msra.mxu0 0.0
    %1171 = vmatprep.subr.mxu0 0.0
    %1172 = vmatpush1.xpose.msra.mxu0 0.0
    %1173 = vmatprep.subr.mxu0 0.0
    %1174 = vmatpush1.xpose.msra.mxu0 0.0
    %1175 = vmatprep.subr.mxu0 0.0
    %1176 = vmatpush1.xpose.msra.mxu0 0.0
    %1177 = vmatprep.subr.mxu0 0.0
    %1178 = vmatpush1.xpose.msra.mxu0 0.0
    %1179 = vmatprep.subr.mxu0 0.0
    %1180 = vmatpush1.xpose.msra.mxu0 0.0
    %1181 = vmatprep.subr.mxu0 0.0
    %1182 = vmatpush1.xpose.msra.mxu0 0.0
    %1183 = vmatprep.subr.mxu0 0.0
    %1184 = vmatpush1.xpose.msra.mxu0 0.0
    %1185 = vmatprep.mubr.f32.mxu0 0.0
    %v1186 = vand.u32 %v731, 4294901760
    %v1187 = vsub.f32 %v731, %v1186
    %v1188 = vand.u32 %v1187, 4294901760
    %1189 = vmatmul.mubr.f32.gmra.mrb[0].mxu0 %v1188
    %v1190 = vpop.f32.mrb[0].mxu0
    %v1191 = vadd.f32 %v1099, %v1190
    %v1192 = vpop.f32.mrb[0].mxu0
    %1193 = vmatprep.mubr.f32.mxu0 0.0
    %v1194 = vand.u32 %v734, 4294901760
    %v1195 = vsub.f32 %v734, %v1194
    %v1196 = vand.u32 %v1195, 4294901760
    %1197 = vmatmul.mubr.f32.gmra.mrb[0].mxu0 %v1196
    %v1198 = vpop.f32.mrb[0].mxu0
    %v1199 = vadd.f32 %v1106, %v1198
    %v1200 = vpop.f32.mrb[0].mxu0
    %1201 = vdwg.mxu0
    %1202 = vmatprep.subr.mxu0 0.0
    %v1203 = vand.u32 %v737, 4294901760
    %v1204 = vsub.f32 %v737, %v1203
    %v1205 = vand.u32 %v1204, 4294901760
    %1206 = vmatpush1.xpose.msra.mxu0 %v1205
    %1207 = vmatprep.subr.mxu0 0.0
    %v1208 = vand.u32 %v740, 4294901760
    %v1209 = vsub.f32 %v740, %v1208
    %v1210 = vand.u32 %v1209, 4294901760
    %1211 = vmatpush1.xpose.msra.mxu0 %v1210
    %1212 = vmatprep.subr.mxu0 0.0
    %v1213 = vand.u32 %v743, 4294901760
    %v1214 = vsub.f32 %v743, %v1213
    %v1215 = vand.u32 %v1214, 4294901760
    %1216 = vmatpush1.xpose.msra.mxu0 %v1215
    %1217 = vmatprep.subr.mxu0 0.0
    %v1218 = vand.u32 %v746, 4294901760
    %v1219 = vsub.f32 %v746, %v1218
    %v1220 = vand.u32 %v1219, 4294901760
    %1221 = vmatpush1.xpose.msra.mxu0 %v1220
    %1222 = vmatprep.subr.mxu0 0.0
    %v1223 = vand.u32 %v749, 4294901760
    %v1224 = vsub.f32 %v749, %v1223
    %v1225 = vand.u32 %v1224, 4294901760
    %1226 = vmatpush1.xpose.msra.mxu0 %v1225
    %1227 = vmatprep.subr.mxu0 0.0
    %v1228 = vand.u32 %v752, 4294901760
    %v1229 = vsub.f32 %v752, %v1228
    %v1230 = vand.u32 %v1229, 4294901760
    %1231 = vmatpush1.xpose.msra.mxu0 %v1230
    %1232 = vmatprep.subr.mxu0 0.0
    %v1233 = vand.u32 %v755, 4294901760
    %v1234 = vsub.f32 %v755, %v1233
    %v1235 = vand.u32 %v1234, 4294901760
    %1236 = vmatpush1.xpose.msra.mxu0 %v1235
    %1237 = vmatprep.subr.mxu0 0.0
    %v1238 = vand.u32 %v758, 4294901760
    %v1239 = vsub.f32 %v758, %v1238
    %v1240 = vand.u32 %v1239, 4294901760
    %1241 = vmatpush1.xpose.msra.mxu0 %v1240
    %1242 = vmatprep.subr.mxu0 0.0
    %v1243 = vand.u32 %v761, 4294901760
    %v1244 = vsub.f32 %v761, %v1243
    %v1245 = vand.u32 %v1244, 4294901760
    %1246 = vmatpush1.xpose.msra.mxu0 %v1245
    %1247 = vmatprep.subr.mxu0 0.0
    %v1248 = vand.u32 %v764, 4294901760
    %v1249 = vsub.f32 %v764, %v1248
    %v1250 = vand.u32 %v1249, 4294901760
    %1251 = vmatpush1.xpose.msra.mxu0 %v1250
    %1252 = vmatprep.subr.mxu0 0.0
    %v1253 = vand.u32 %v767, 4294901760
    %v1254 = vsub.f32 %v767, %v1253
    %v1255 = vand.u32 %v1254, 4294901760
    %1256 = vmatpush1.xpose.msra.mxu0 %v1255
    %1257 = vmatprep.subr.mxu0 0.0
    %v1258 = vand.u32 %v770, 4294901760
    %v1259 = vsub.f32 %v770, %v1258
    %v1260 = vand.u32 %v1259, 4294901760
    %1261 = vmatpush1.xpose.msra.mxu0 %v1260
    %1262 = vmatprep.subr.mxu0 0.0
    %1263 = vmatpush1.xpose.msra.mxu0 0.0
    %1264 = vmatprep.subr.mxu0 0.0
    %1265 = vmatpush1.xpose.msra.mxu0 0.0
    %1266 = vmatprep.subr.mxu0 0.0
    %1267 = vmatpush1.xpose.msra.mxu0 0.0
    %1268 = vmatprep.subr.mxu0 0.0
    %1269 = vmatpush1.xpose.msra.mxu0 0.0
    %1270 = vmatprep.subr.mxu0 0.0
    %1271 = vmatpush1.xpose.msra.mxu0 0.0
    %1272 = vmatprep.subr.mxu0 0.0
    %1273 = vmatpush1.xpose.msra.mxu0 0.0
    %1274 = vmatprep.subr.mxu0 0.0
    %1275 = vmatpush1.xpose.msra.mxu0 0.0
    %1276 = vmatprep.subr.mxu0 0.0
    %1277 = vmatpush1.xpose.msra.mxu0 0.0
    %1278 = vmatprep.subr.mxu0 0.0
    %1279 = vmatpush1.xpose.msra.mxu0 0.0
    %1280 = vmatprep.subr.mxu0 0.0
    %1281 = vmatpush1.xpose.msra.mxu0 0.0
    %1282 = vmatprep.subr.mxu0 0.0
    %1283 = vmatpush1.xpose.msra.mxu0 0.0
    %1284 = vmatprep.subr.mxu0 0.0
    %1285 = vmatpush1.xpose.msra.mxu0 0.0
    %1286 = vmatprep.subr.mxu0 0.0
    %1287 = vmatpush1.xpose.msra.mxu0 0.0
    %1288 = vmatprep.subr.mxu0 0.0
    %1289 = vmatpush1.xpose.msra.mxu0 0.0
    %1290 = vmatprep.subr.mxu0 0.0
    %1291 = vmatpush1.xpose.msra.mxu0 0.0
    %1292 = vmatprep.subr.mxu0 0.0
    %1293 = vmatpush1.xpose.msra.mxu0 0.0
    %1294 = vmatprep.subr.mxu0 0.0
    %1295 = vmatpush1.xpose.msra.mxu0 0.0
    %1296 = vmatprep.subr.mxu0 0.0
    %1297 = vmatpush1.xpose.msra.mxu0 0.0
    %1298 = vmatprep.subr.mxu0 0.0
    %1299 = vmatpush1.xpose.msra.mxu0 0.0
    %1300 = vmatprep.subr.mxu0 0.0
    %1301 = vmatpush1.xpose.msra.mxu0 0.0
    %1302 = vmatprep.mubr.f32.mxu0 0.0
    %v1303 = vand.u32 %v731, 4294901760
    %1304 = vmatmul.mubr.f32.gmra.mrb[0].mxu0 %v1303
    %v1305 = vpop.f32.mrb[0].mxu0
    %v1306 = vadd.f32 %v1191, %v1305
    %v1307 = vpop.f32.mrb[0].mxu0
    %1308 = vmatprep.mubr.f32.mxu0 0.0
    %v1309 = vand.u32 %v734, 4294901760
    %1310 = vmatmul.mubr.f32.gmra.mrb[0].mxu0 %v1309
    %v1311 = vpop.f32.mrb[0].mxu0
    %v1312 = vadd.f32 %v1199, %v1311
    %v1313 = vpop.f32.mrb[0].mxu0
    %1314 = vdwg.mxu0
    %1315 = vmatprep.subr.mxu0 0.0
    %v1316 = vand.u32 %v737, 4294901760
    %1317 = vmatpush1.xpose.msra.mxu0 %v1316
    %1318 = vmatprep.subr.mxu0 0.0
    %v1319 = vand.u32 %v740, 4294901760
    %1320 = vmatpush1.xpose.msra.mxu0 %v1319
    %1321 = vmatprep.subr.mxu0 0.0
    %v1322 = vand.u32 %v743, 4294901760
    %1323 = vmatpush1.xpose.msra.mxu0 %v1322
    %1324 = vmatprep.subr.mxu0 0.0
    %v1325 = vand.u32 %v746, 4294901760
    %1326 = vmatpush1.xpose.msra.mxu0 %v1325
    %1327 = vmatprep.subr.mxu0 0.0
    %v1328 = vand.u32 %v749, 4294901760
    %1329 = vmatpush1.xpose.msra.mxu0 %v1328
    %1330 = vmatprep.subr.mxu0 0.0
    %v1331 = vand.u32 %v752, 4294901760
    %1332 = vmatpush1.xpose.msra.mxu0 %v1331
    %1333 = vmatprep.subr.mxu0 0.0
    %v1334 = vand.u32 %v755, 4294901760
    %1335 = vmatpush1.xpose.msra.mxu0 %v1334
    %1336 = vmatprep.subr.mxu0 0.0
    %v1337 = vand.u32 %v758, 4294901760
    %1338 = vmatpush1.xpose.msra.mxu0 %v1337
    %1339 = vmatprep.subr.mxu0 0.0
    %v1340 = vand.u32 %v761, 4294901760
    %1341 = vmatpush1.xpose.msra.mxu0 %v1340
    %1342 = vmatprep.subr.mxu0 0.0
    %v1343 = vand.u32 %v764, 4294901760
    %1344 = vmatpush1.xpose.msra.mxu0 %v1343
    %1345 = vmatprep.subr.mxu0 0.0
    %v1346 = vand.u32 %v767, 4294901760
    %1347 = vmatpush1.xpose.msra.mxu0 %v1346
    %1348 = vmatprep.subr.mxu0 0.0
    %v1349 = vand.u32 %v770, 4294901760
    %1350 = vmatpush1.xpose.msra.mxu0 %v1349
    %1351 = vmatprep.subr.mxu0 0.0
    %1352 = vmatpush1.xpose.msra.mxu0 0.0
    %1353 = vmatprep.subr.mxu0 0.0
    %1354 = vmatpush1.xpose.msra.mxu0 0.0
    %1355 = vmatprep.subr.mxu0 0.0
    %1356 = vmatpush1.xpose.msra.mxu0 0.0
    %1357 = vmatprep.subr.mxu0 0.0
    %1358 = vmatpush1.xpose.msra.mxu0 0.0
    %1359 = vmatprep.subr.mxu0 0.0
    %1360 = vmatpush1.xpose.msra.mxu0 0.0
    %1361 = vmatprep.subr.mxu0 0.0
    %1362 = vmatpush1.xpose.msra.mxu0 0.0
    %1363 = vmatprep.subr.mxu0 0.0
    %1364 = vmatpush1.xpose.msra.mxu0 0.0
    %1365 = vmatprep.subr.mxu0 0.0
    %1366 = vmatpush1.xpose.msra.mxu0 0.0
    %1367 = vmatprep.subr.mxu0 0.0
    %1368 = vmatpush1.xpose.msra.mxu0 0.0
    %1369 = vmatprep.subr.mxu0 0.0
    %1370 = vmatpush1.xpose.msra.mxu0 0.0
    %1371 = vmatprep.subr.mxu0 0.0
    %1372 = vmatpush1.xpose.msra.mxu0 0.0
    %1373 = vmatprep.subr.mxu0 0.0
    %1374 = vmatpush1.xpose.msra.mxu0 0.0
    %1375 = vmatprep.subr.mxu0 0.0
    %1376 = vmatpush1.xpose.msra.mxu0 0.0
    %1377 = vmatprep.subr.mxu0 0.0
    %1378 = vmatpush1.xpose.msra.mxu0 0.0
    %1379 = vmatprep.subr.mxu0 0.0
    %1380 = vmatpush1.xpose.msra.mxu0 0.0
    %1381 = vmatprep.subr.mxu0 0.0
    %1382 = vmatpush1.xpose.msra.mxu0 0.0
    %1383 = vmatprep.subr.mxu0 0.0
    %1384 = vmatpush1.xpose.msra.mxu0 0.0
    %1385 = vmatprep.subr.mxu0 0.0
    %1386 = vmatpush1.xpose.msra.mxu0 0.0
    %1387 = vmatprep.subr.mxu0 0.0
    %1388 = vmatpush1.xpose.msra.mxu0 0.0
    %1389 = vmatprep.subr.mxu0 0.0
    %1390 = vmatpush1.xpose.msra.mxu0 0.0
    %1391 = vmatprep.mubr.f32.mxu0 0.0
    %v1392 = vand.u32 %v731, 4294901760
    %1393 = vmatmul.mubr.f32.gmra.mrb[0].mxu0 %v1392
    %v1394 = vpop.f32.mrb[0].mxu0
    %v1395 = vadd.f32 %v1306, %v1394
    %v1396 = vpop.f32.mrb[0].mxu0
    %1397 = vmatprep.mubr.f32.mxu0 0.0
    %v1398 = vand.u32 %v734, 4294901760
    %1399 = vmatmul.mubr.f32.gmra.mrb[0].mxu0 %v1398
    %v1400 = vpop.f32.mrb[0].mxu0
    %v1401 = vadd.f32 %v1312, %v1400
    %v1402 = vpop.f32.mrb[0].mxu0
    %1403 = vdwg.mxu0
    %1404 = vmatprep.subr.mxu0 0.0
    %v1405 = vand.u32 %v63, 4294901760
    %1406 = vmatpush1.xpose.msra.mxu0 %v1405
    %1407 = vmatprep.subr.mxu0 0.0
    %v1408 = vand.u32 %v66, 4294901760
    %1409 = vmatpush1.xpose.msra.mxu0 %v1408
    %1410 = vmatprep.subr.mxu0 0.0
    %v1411 = vand.u32 %v69, 4294901760
    %1412 = vmatpush1.xpose.msra.mxu0 %v1411
    %1413 = vmatprep.subr.mxu0 0.0
    %v1414 = vand.u32 %v72, 4294901760
    %1415 = vmatpush1.xpose.msra.mxu0 %v1414
    %1416 = vmatprep.subr.mxu0 0.0
    %v1417 = vand.u32 %v75, 4294901760
    %1418 = vmatpush1.xpose.msra.mxu0 %v1417
    %1419 = vmatprep.subr.mxu0 0.0
    %v1420 = vand.u32 %v78, 4294901760
    %1421 = vmatpush1.xpose.msra.mxu0 %v1420
    %1422 = vmatprep.subr.mxu0 0.0
    %v1423 = vand.u32 %v81, 4294901760
    %1424 = vmatpush1.xpose.msra.mxu0 %v1423
    %1425 = vmatprep.subr.mxu0 0.0
    %v1426 = vand.u32 %v84, 4294901760
    %1427 = vmatpush1.xpose.msra.mxu0 %v1426
    %1428 = vmatprep.subr.mxu0 0.0
    %v1429 = vand.u32 %v87, 4294901760
    %1430 = vmatpush1.xpose.msra.mxu0 %v1429
    %1431 = vmatprep.subr.mxu0 0.0
    %v1432 = vand.u32 %v90, 4294901760
    %1433 = vmatpush1.xpose.msra.mxu0 %v1432
    %1434 = vmatprep.subr.mxu0 0.0
    %v1435 = vand.u32 %v93, 4294901760
    %1436 = vmatpush1.xpose.msra.mxu0 %v1435
    %1437 = vmatprep.subr.mxu0 0.0
    %v1438 = vand.u32 %v96, 4294901760
    %1439 = vmatpush1.xpose.msra.mxu0 %v1438
    %1440 = vmatprep.subr.mxu0 0.0
    %1441 = vmatpush1.xpose.msra.mxu0 0.0
    %1442 = vmatprep.subr.mxu0 0.0
    %1443 = vmatpush1.xpose.msra.mxu0 0.0
    %1444 = vmatprep.subr.mxu0 0.0
    %1445 = vmatpush1.xpose.msra.mxu0 0.0
    %1446 = vmatprep.subr.mxu0 0.0
    %1447 = vmatpush1.xpose.msra.mxu0 0.0
    %1448 = vmatprep.subr.mxu0 0.0
    %1449 = vmatpush1.xpose.msra.mxu0 0.0
    %1450 = vmatprep.subr.mxu0 0.0
    %1451 = vmatpush1.xpose.msra.mxu0 0.0
    %1452 = vmatprep.subr.mxu0 0.0
    %1453 = vmatpush1.xpose.msra.mxu0 0.0
    %1454 = vmatprep.subr.mxu0 0.0
    %1455 = vmatpush1.xpose.msra.mxu0 0.0
    %1456 = vmatprep.subr.mxu0 0.0
    %1457 = vmatpush1.xpose.msra.mxu0 0.0
    %1458 = vmatprep.subr.mxu0 0.0
    %1459 = vmatpush1.xpose.msra.mxu0 0.0
    %1460 = vmatprep.subr.mxu0 0.0
    %1461 = vmatpush1.xpose.msra.mxu0 0.0
    %1462 = vmatprep.subr.mxu0 0.0
    %1463 = vmatpush1.xpose.msra.mxu0 0.0
    %1464 = vmatprep.subr.mxu0 0.0
    %1465 = vmatpush1.xpose.msra.mxu0 0.0
    %1466 = vmatprep.subr.mxu0 0.0
    %1467 = vmatpush1.xpose.msra.mxu0 0.0
    %1468 = vmatprep.subr.mxu0 0.0
    %1469 = vmatpush1.xpose.msra.mxu0 0.0
    %1470 = vmatprep.subr.mxu0 0.0
    %1471 = vmatpush1.xpose.msra.mxu0 0.0
    %1472 = vmatprep.subr.mxu0 0.0
    %1473 = vmatpush1.xpose.msra.mxu0 0.0
    %1474 = vmatprep.subr.mxu0 0.0
    %1475 = vmatpush1.xpose.msra.mxu0 0.0
    %1476 = vmatprep.subr.mxu0 0.0
    %1477 = vmatpush1.xpose.msra.mxu0 0.0
    %1478 = vmatprep.subr.mxu0 0.0
    %1479 = vmatpush1.xpose.msra.mxu0 0.0
    %1480 = vmatprep.mubr.f32.mxu0 0.0
    %v1481 = vand.u32 %v731, 4294901760
    %v1482 = vsub.f32 %v731, %v1481
    %v1483 = vand.u32 %v1482, 4294901760
    %v1484 = vsub.f32 %v1482, %v1483
    %v1485 = vand.u32 %v1484, 4294901760
    %1486 = vmatmul.mubr.f32.gmra.mrb[0].mxu0 %v1485
    %v1487 = vpop.f32.mrb[0].mxu0
    %v1488 = vadd.f32 0.0, %v1487
    %v1489 = vpop.f32.mrb[0].mxu0
    %1490 = vmatprep.mubr.f32.mxu0 0.0
    %v1491 = vand.u32 %v734, 4294901760
    %v1492 = vsub.f32 %v734, %v1491
    %v1493 = vand.u32 %v1492, 4294901760
    %v1494 = vsub.f32 %v1492, %v1493
    %v1495 = vand.u32 %v1494, 4294901760
    %1496 = vmatmul.mubr.f32.gmra.mrb[0].mxu0 %v1495
    %v1497 = vpop.f32.mrb[0].mxu0
    %v1498 = vadd.f32 0.0, %v1497
    %v1499 = vpop.f32.mrb[0].mxu0
    %1500 = vdwg.mxu0
    %1501 = vmatprep.subr.mxu0 0.0
    %v1502 = vand.u32 %v63, 4294901760
    %v1503 = vsub.f32 %v63, %v1502
    %v1504 = vand.u32 %v1503, 4294901760
    %v1505 = vsub.f32 %v1503, %v1504
    %v1506 = vand.u32 %v1505, 4294901760
    %1507 = vmatpush1.xpose.msra.mxu0 %v1506
    %1508 = vmatprep.subr.mxu0 0.0
    %v1509 = vand.u32 %v66, 4294901760
    %v1510 = vsub.f32 %v66, %v1509
    %v1511 = vand.u32 %v1510, 4294901760
    %v1512 = vsub.f32 %v1510, %v1511
    %v1513 = vand.u32 %v1512, 4294901760
    %1514 = vmatpush1.xpose.msra.mxu0 %v1513
    %1515 = vmatprep.subr.mxu0 0.0
    %v1516 = vand.u32 %v69, 4294901760
    %v1517 = vsub.f32 %v69, %v1516
    %v1518 = vand.u32 %v1517, 4294901760
    %v1519 = vsub.f32 %v1517, %v1518
    %v1520 = vand.u32 %v1519, 4294901760
    %1521 = vmatpush1.xpose.msra.mxu0 %v1520
    %1522 = vmatprep.subr.mxu0 0.0
    %v1523 = vand.u32 %v72, 4294901760
    %v1524 = vsub.f32 %v72, %v1523
    %v1525 = vand.u32 %v1524, 4294901760
    %v1526 = vsub.f32 %v1524, %v1525
    %v1527 = vand.u32 %v1526, 4294901760
    %1528 = vmatpush1.xpose.msra.mxu0 %v1527
    %1529 = vmatprep.subr.mxu0 0.0
    %v1530 = vand.u32 %v75, 4294901760
    %v1531 = vsub.f32 %v75, %v1530
    %v1532 = vand.u32 %v1531, 4294901760
    %v1533 = vsub.f32 %v1531, %v1532
    %v1534 = vand.u32 %v1533, 4294901760
    %1535 = vmatpush1.xpose.msra.mxu0 %v1534
    %1536 = vmatprep.subr.mxu0 0.0
    %v1537 = vand.u32 %v78, 4294901760
    %v1538 = vsub.f32 %v78, %v1537
    %v1539 = vand.u32 %v1538, 4294901760
    %v1540 = vsub.f32 %v1538, %v1539
    %v1541 = vand.u32 %v1540, 4294901760
    %1542 = vmatpush1.xpose.msra.mxu0 %v1541
    %1543 = vmatprep.subr.mxu0 0.0
    %v1544 = vand.u32 %v81, 4294901760
    %v1545 = vsub.f32 %v81, %v1544
    %v1546 = vand.u32 %v1545, 4294901760
    %v1547 = vsub.f32 %v1545, %v1546
    %v1548 = vand.u32 %v1547, 4294901760
    %1549 = vmatpush1.xpose.msra.mxu0 %v1548
    %1550 = vmatprep.subr.mxu0 0.0
    %v1551 = vand.u32 %v84, 4294901760
    %v1552 = vsub.f32 %v84, %v1551
    %v1553 = vand.u32 %v1552, 4294901760
    %v1554 = vsub.f32 %v1552, %v1553
    %v1555 = vand.u32 %v1554, 4294901760
    %1556 = vmatpush1.xpose.msra.mxu0 %v1555
    %1557 = vmatprep.subr.mxu0 0.0
    %v1558 = vand.u32 %v87, 4294901760
    %v1559 = vsub.f32 %v87, %v1558
    %v1560 = vand.u32 %v1559, 4294901760
    %v1561 = vsub.f32 %v1559, %v1560
    %v1562 = vand.u32 %v1561, 4294901760
    %1563 = vmatpush1.xpose.msra.mxu0 %v1562
    %1564 = vmatprep.subr.mxu0 0.0
    %v1565 = vand.u32 %v90, 4294901760
    %v1566 = vsub.f32 %v90, %v1565
    %v1567 = vand.u32 %v1566, 4294901760
    %v1568 = vsub.f32 %v1566, %v1567
    %v1569 = vand.u32 %v1568, 4294901760
    %1570 = vmatpush1.xpose.msra.mxu0 %v1569
    %1571 = vmatprep.subr.mxu0 0.0
    %v1572 = vand.u32 %v93, 4294901760
    %v1573 = vsub.f32 %v93, %v1572
    %v1574 = vand.u32 %v1573, 4294901760
    %v1575 = vsub.f32 %v1573, %v1574
    %v1576 = vand.u32 %v1575, 4294901760
    %1577 = vmatpush1.xpose.msra.mxu0 %v1576
    %1578 = vmatprep.subr.mxu0 0.0
    %v1579 = vand.u32 %v96, 4294901760
    %v1580 = vsub.f32 %v96, %v1579
    %v1581 = vand.u32 %v1580, 4294901760
    %v1582 = vsub.f32 %v1580, %v1581
    %v1583 = vand.u32 %v1582, 4294901760
    %1584 = vmatpush1.xpose.msra.mxu0 %v1583
    %1585 = vmatprep.subr.mxu0 0.0
    %1586 = vmatpush1.xpose.msra.mxu0 0.0
    %1587 = vmatprep.subr.mxu0 0.0
    %1588 = vmatpush1.xpose.msra.mxu0 0.0
    %1589 = vmatprep.subr.mxu0 0.0
    %1590 = vmatpush1.xpose.msra.mxu0 0.0
    %1591 = vmatprep.subr.mxu0 0.0
    %1592 = vmatpush1.xpose.msra.mxu0 0.0
    %1593 = vmatprep.subr.mxu0 0.0
    %1594 = vmatpush1.xpose.msra.mxu0 0.0
    %1595 = vmatprep.subr.mxu0 0.0
    %1596 = vmatpush1.xpose.msra.mxu0 0.0
    %1597 = vmatprep.subr.mxu0 0.0
    %1598 = vmatpush1.xpose.msra.mxu0 0.0
    %1599 = vmatprep.subr.mxu0 0.0
    %1600 = vmatpush1.xpose.msra.mxu0 0.0
    %1601 = vmatprep.subr.mxu0 0.0
    %1602 = vmatpush1.xpose.msra.mxu0 0.0
    %1603 = vmatprep.subr.mxu0 0.0
    %1604 = vmatpush1.xpose.msra.mxu0 0.0
    %1605 = vmatprep.subr.mxu0 0.0
    %1606 = vmatpush1.xpose.msra.mxu0 0.0
    %1607 = vmatprep.subr.mxu0 0.0
    %1608 = vmatpush1.xpose.msra.mxu0 0.0
    %1609 = vmatprep.subr.mxu0 0.0
    %1610 = vmatpush1.xpose.msra.mxu0 0.0
    %1611 = vmatprep.subr.mxu0 0.0
    %1612 = vmatpush1.xpose.msra.mxu0 0.0
    %1613 = vmatprep.subr.mxu0 0.0
    %1614 = vmatpush1.xpose.msra.mxu0 0.0
    %1615 = vmatprep.subr.mxu0 0.0
    %1616 = vmatpush1.xpose.msra.mxu0 0.0
    %1617 = vmatprep.subr.mxu0 0.0
    %1618 = vmatpush1.xpose.msra.mxu0 0.0
    %1619 = vmatprep.subr.mxu0 0.0
    %1620 = vmatpush1.xpose.msra.mxu0 0.0
    %1621 = vmatprep.subr.mxu0 0.0
    %1622 = vmatpush1.xpose.msra.mxu0 0.0
    %1623 = vmatprep.subr.mxu0 0.0
    %1624 = vmatpush1.xpose.msra.mxu0 0.0
    %1625 = vmatprep.mubr.f32.mxu0 0.0
    %v1626 = vand.u32 %v731, 4294901760
    %1627 = vmatmul.mubr.f32.gmra.mrb[0].mxu0 %v1626
    %v1628 = vpop.f32.mrb[0].mxu0
    %v1629 = vadd.f32 %v1488, %v1628
    %v1630 = vpop.f32.mrb[0].mxu0
    %1631 = vmatprep.mubr.f32.mxu0 0.0
    %v1632 = vand.u32 %v734, 4294901760
    %1633 = vmatmul.mubr.f32.gmra.mrb[0].mxu0 %v1632
    %v1634 = vpop.f32.mrb[0].mxu0
    %v1635 = vadd.f32 %v1498, %v1634
    %v1636 = vpop.f32.mrb[0].mxu0
    %1637 = vdwg.mxu0
    %1638 = vmatprep.subr.mxu0 0.0
    %v1639 = vand.u32 %v63, 4294901760
    %v1640 = vsub.f32 %v63, %v1639
    %1641 = vmatpush1.xpose.msra.mxu0 %v1640
    %1642 = vmatprep.subr.mxu0 0.0
    %v1643 = vand.u32 %v66, 4294901760
    %v1644 = vsub.f32 %v66, %v1643
    %1645 = vmatpush1.xpose.msra.mxu0 %v1644
    %1646 = vmatprep.subr.mxu0 0.0
    %v1647 = vand.u32 %v69, 4294901760
    %v1648 = vsub.f32 %v69, %v1647
    %1649 = vmatpush1.xpose.msra.mxu0 %v1648
    %1650 = vmatprep.subr.mxu0 0.0
    %v1651 = vand.u32 %v72, 4294901760
    %v1652 = vsub.f32 %v72, %v1651
    %1653 = vmatpush1.xpose.msra.mxu0 %v1652
    %1654 = vmatprep.subr.mxu0 0.0
    %v1655 = vand.u32 %v75, 4294901760
    %v1656 = vsub.f32 %v75, %v1655
    %1657 = vmatpush1.xpose.msra.mxu0 %v1656
    %1658 = vmatprep.subr.mxu0 0.0
    %v1659 = vand.u32 %v78, 4294901760
    %v1660 = vsub.f32 %v78, %v1659
    %1661 = vmatpush1.xpose.msra.mxu0 %v1660
    %1662 = vmatprep.subr.mxu0 0.0
    %v1663 = vand.u32 %v81, 4294901760
    %v1664 = vsub.f32 %v81, %v1663
    %1665 = vmatpush1.xpose.msra.mxu0 %v1664
    %1666 = vmatprep.subr.mxu0 0.0
    %v1667 = vand.u32 %v84, 4294901760
    %v1668 = vsub.f32 %v84, %v1667
    %1669 = vmatpush1.xpose.msra.mxu0 %v1668
    %1670 = vmatprep.subr.mxu0 0.0
    %v1671 = vand.u32 %v87, 4294901760
    %v1672 = vsub.f32 %v87, %v1671
    %1673 = vmatpush1.xpose.msra.mxu0 %v1672
    %1674 = vmatprep.subr.mxu0 0.0
    %v1675 = vand.u32 %v90, 4294901760
    %v1676 = vsub.f32 %v90, %v1675
    %1677 = vmatpush1.xpose.msra.mxu0 %v1676
    %1678 = vmatprep.subr.mxu0 0.0
    %v1679 = vand.u32 %v93, 4294901760
    %v1680 = vsub.f32 %v93, %v1679
    %1681 = vmatpush1.xpose.msra.mxu0 %v1680
    %1682 = vmatprep.subr.mxu0 0.0
    %v1683 = vand.u32 %v96, 4294901760
    %v1684 = vsub.f32 %v96, %v1683
    %1685 = vmatpush1.xpose.msra.mxu0 %v1684
    %1686 = vmatprep.subr.mxu0 0.0
    %1687 = vmatpush1.xpose.msra.mxu0 0.0
    %1688 = vmatprep.subr.mxu0 0.0
    %1689 = vmatpush1.xpose.msra.mxu0 0.0
    %1690 = vmatprep.subr.mxu0 0.0
    %1691 = vmatpush1.xpose.msra.mxu0 0.0
    %1692 = vmatprep.subr.mxu0 0.0
    %1693 = vmatpush1.xpose.msra.mxu0 0.0
    %1694 = vmatprep.subr.mxu0 0.0
    %1695 = vmatpush1.xpose.msra.mxu0 0.0
    %1696 = vmatprep.subr.mxu0 0.0
    %1697 = vmatpush1.xpose.msra.mxu0 0.0
    %1698 = vmatprep.subr.mxu0 0.0
    %1699 = vmatpush1.xpose.msra.mxu0 0.0
    %1700 = vmatprep.subr.mxu0 0.0
    %1701 = vmatpush1.xpose.msra.mxu0 0.0
    %1702 = vmatprep.subr.mxu0 0.0
    %1703 = vmatpush1.xpose.msra.mxu0 0.0
    %1704 = vmatprep.subr.mxu0 0.0
    %1705 = vmatpush1.xpose.msra.mxu0 0.0
    %1706 = vmatprep.subr.mxu0 0.0
    %1707 = vmatpush1.xpose.msra.mxu0 0.0
    %1708 = vmatprep.subr.mxu0 0.0
    %1709 = vmatpush1.xpose.msra.mxu0 0.0
    %1710 = vmatprep.subr.mxu0 0.0
    %1711 = vmatpush1.xpose.msra.mxu0 0.0
    %1712 = vmatprep.subr.mxu0 0.0
    %1713 = vmatpush1.xpose.msra.mxu0 0.0
    %1714 = vmatprep.subr.mxu0 0.0
    %1715 = vmatpush1.xpose.msra.mxu0 0.0
    %1716 = vmatprep.subr.mxu0 0.0
    %1717 = vmatpush1.xpose.msra.mxu0 0.0
    %1718 = vmatprep.subr.mxu0 0.0
    %1719 = vmatpush1.xpose.msra.mxu0 0.0
    %1720 = vmatprep.subr.mxu0 0.0
    %1721 = vmatpush1.xpose.msra.mxu0 0.0
    %1722 = vmatprep.subr.mxu0 0.0
    %1723 = vmatpush1.xpose.msra.mxu0 0.0
    %1724 = vmatprep.subr.mxu0 0.0
    %1725 = vmatpush1.xpose.msra.mxu0 0.0
    %1726 = vmatprep.mubr.f32.mxu0 0.0
    %v1727 = vand.u32 %v731, 4294901760
    %v1728 = vsub.f32 %v731, %v1727
    %1729 = vmatmul.mubr.f32.gmra.mrb[0].mxu0 %v1728
    %v1730 = vpop.f32.mrb[0].mxu0
    %v1731 = vadd.f32 %v1629, %v1730
    %v1732 = vpop.f32.mrb[0].mxu0
    %1733 = vmatprep.mubr.f32.mxu0 0.0
    %v1734 = vand.u32 %v734, 4294901760
    %v1735 = vsub.f32 %v734, %v1734
    %1736 = vmatmul.mubr.f32.gmra.mrb[0].mxu0 %v1735
    %v1737 = vpop.f32.mrb[0].mxu0
    %v1738 = vadd.f32 %v1635, %v1737
    %v1739 = vpop.f32.mrb[0].mxu0
    %1740 = vdwg.mxu0
    %1741 = vmatprep.subr.mxu0 0.0
    %v1742 = vand.u32 %v63, 4294901760
    %1743 = vmatpush1.xpose.msra.mxu0 %v1742
    %1744 = vmatprep.subr.mxu0 0.0
    %v1745 = vand.u32 %v66, 4294901760
    %1746 = vmatpush1.xpose.msra.mxu0 %v1745
    %1747 = vmatprep.subr.mxu0 0.0
    %v1748 = vand.u32 %v69, 4294901760
    %1749 = vmatpush1.xpose.msra.mxu0 %v1748
    %1750 = vmatprep.subr.mxu0 0.0
    %v1751 = vand.u32 %v72, 4294901760
    %1752 = vmatpush1.xpose.msra.mxu0 %v1751
    %1753 = vmatprep.subr.mxu0 0.0
    %v1754 = vand.u32 %v75, 4294901760
    %1755 = vmatpush1.xpose.msra.mxu0 %v1754
    %1756 = vmatprep.subr.mxu0 0.0
    %v1757 = vand.u32 %v78, 4294901760
    %1758 = vmatpush1.xpose.msra.mxu0 %v1757
    %1759 = vmatprep.subr.mxu0 0.0
    %v1760 = vand.u32 %v81, 4294901760
    %1761 = vmatpush1.xpose.msra.mxu0 %v1760
    %1762 = vmatprep.subr.mxu0 0.0
    %v1763 = vand.u32 %v84, 4294901760
    %1764 = vmatpush1.xpose.msra.mxu0 %v1763
    %1765 = vmatprep.subr.mxu0 0.0
    %v1766 = vand.u32 %v87, 4294901760
    %1767 = vmatpush1.xpose.msra.mxu0 %v1766
    %1768 = vmatprep.subr.mxu0 0.0
    %v1769 = vand.u32 %v90, 4294901760
    %1770 = vmatpush1.xpose.msra.mxu0 %v1769
    %1771 = vmatprep.subr.mxu0 0.0
    %v1772 = vand.u32 %v93, 4294901760
    %1773 = vmatpush1.xpose.msra.mxu0 %v1772
    %1774 = vmatprep.subr.mxu0 0.0
    %v1775 = vand.u32 %v96, 4294901760
    %1776 = vmatpush1.xpose.msra.mxu0 %v1775
    %1777 = vmatprep.subr.mxu0 0.0
    %1778 = vmatpush1.xpose.msra.mxu0 0.0
    %1779 = vmatprep.subr.mxu0 0.0
    %1780 = vmatpush1.xpose.msra.mxu0 0.0
    %1781 = vmatprep.subr.mxu0 0.0
    %1782 = vmatpush1.xpose.msra.mxu0 0.0
    %1783 = vmatprep.subr.mxu0 0.0
    %1784 = vmatpush1.xpose.msra.mxu0 0.0
    %1785 = vmatprep.subr.mxu0 0.0
    %1786 = vmatpush1.xpose.msra.mxu0 0.0
    %1787 = vmatprep.subr.mxu0 0.0
    %1788 = vmatpush1.xpose.msra.mxu0 0.0
    %1789 = vmatprep.subr.mxu0 0.0
    %1790 = vmatpush1.xpose.msra.mxu0 0.0
    %1791 = vmatprep.subr.mxu0 0.0
    %1792 = vmatpush1.xpose.msra.mxu0 0.0
    %1793 = vmatprep.subr.mxu0 0.0
    %1794 = vmatpush1.xpose.msra.mxu0 0.0
    %1795 = vmatprep.subr.mxu0 0.0
    %1796 = vmatpush1.xpose.msra.mxu0 0.0
    %1797 = vmatprep.subr.mxu0 0.0
    %1798 = vmatpush1.xpose.msra.mxu0 0.0
    %1799 = vmatprep.subr.mxu0 0.0
    %1800 = vmatpush1.xpose.msra.mxu0 0.0
    %1801 = vmatprep.subr.mxu0 0.0
    %1802 = vmatpush1.xpose.msra.mxu0 0.0
    %1803 = vmatprep.subr.mxu0 0.0
    %1804 = vmatpush1.xpose.msra.mxu0 0.0
    %1805 = vmatprep.subr.mxu0 0.0
    %1806 = vmatpush1.xpose.msra.mxu0 0.0
    %1807 = vmatprep.subr.mxu0 0.0
    %1808 = vmatpush1.xpose.msra.mxu0 0.0
    %1809 = vmatprep.subr.mxu0 0.0
    %1810 = vmatpush1.xpose.msra.mxu0 0.0
    %1811 = vmatprep.subr.mxu0 0.0
    %1812 = vmatpush1.xpose.msra.mxu0 0.0
    %1813 = vmatprep.subr.mxu0 0.0
    %1814 = vmatpush1.xpose.msra.mxu0 0.0
    %1815 = vmatprep.subr.mxu0 0.0
    %1816 = vmatpush1.xpose.msra.mxu0 0.0
    %1817 = vmatprep.mubr.f32.mxu0 0.0
    %v1818 = vand.u32 %v731, 4294901760
    %v1819 = vsub.f32 %v731, %v1818
    %v1820 = vand.u32 %v1819, 4294901760
    %1821 = vmatmul.mubr.f32.gmra.mrb[0].mxu0 %v1820
    %v1822 = vpop.f32.mrb[0].mxu0
    %v1823 = vadd.f32 %v1731, %v1822
    %v1824 = vpop.f32.mrb[0].mxu0
    %1825 = vmatprep.mubr.f32.mxu0 0.0
    %v1826 = vand.u32 %v734, 4294901760
    %v1827 = vsub.f32 %v734, %v1826
    %v1828 = vand.u32 %v1827, 4294901760
    %1829 = vmatmul.mubr.f32.gmra.mrb[0].mxu0 %v1828
    %v1830 = vpop.f32.mrb[0].mxu0
    %v1831 = vadd.f32 %v1738, %v1830
    %v1832 = vpop.f32.mrb[0].mxu0
    %1833 = vdwg.mxu0
    %1834 = vmatprep.subr.mxu0 0.0
    %v1835 = vand.u32 %v63, 4294901760
    %v1836 = vsub.f32 %v63, %v1835
    %v1837 = vand.u32 %v1836, 4294901760
    %1838 = vmatpush1.xpose.msra.mxu0 %v1837
    %1839 = vmatprep.subr.mxu0 0.0
    %v1840 = vand.u32 %v66, 4294901760
    %v1841 = vsub.f32 %v66, %v1840
    %v1842 = vand.u32 %v1841, 4294901760
    %1843 = vmatpush1.xpose.msra.mxu0 %v1842
    %1844 = vmatprep.subr.mxu0 0.0
    %v1845 = vand.u32 %v69, 4294901760
    %v1846 = vsub.f32 %v69, %v1845
    %v1847 = vand.u32 %v1846, 4294901760
    %1848 = vmatpush1.xpose.msra.mxu0 %v1847
    %1849 = vmatprep.subr.mxu0 0.0
    %v1850 = vand.u32 %v72, 4294901760
    %v1851 = vsub.f32 %v72, %v1850
    %v1852 = vand.u32 %v1851, 4294901760
    %1853 = vmatpush1.xpose.msra.mxu0 %v1852
    %1854 = vmatprep.subr.mxu0 0.0
    %v1855 = vand.u32 %v75, 4294901760
    %v1856 = vsub.f32 %v75, %v1855
    %v1857 = vand.u32 %v1856, 4294901760
    %1858 = vmatpush1.xpose.msra.mxu0 %v1857
    %1859 = vmatprep.subr.mxu0 0.0
    %v1860 = vand.u32 %v78, 4294901760
    %v1861 = vsub.f32 %v78, %v1860
    %v1862 = vand.u32 %v1861, 4294901760
    %1863 = vmatpush1.xpose.msra.mxu0 %v1862
    %1864 = vmatprep.subr.mxu0 0.0
    %v1865 = vand.u32 %v81, 4294901760
    %v1866 = vsub.f32 %v81, %v1865
    %v1867 = vand.u32 %v1866, 4294901760
    %1868 = vmatpush1.xpose.msra.mxu0 %v1867
    %1869 = vmatprep.subr.mxu0 0.0
    %v1870 = vand.u32 %v84, 4294901760
    %v1871 = vsub.f32 %v84, %v1870
    %v1872 = vand.u32 %v1871, 4294901760
    %1873 = vmatpush1.xpose.msra.mxu0 %v1872
    %1874 = vmatprep.subr.mxu0 0.0
    %v1875 = vand.u32 %v87, 4294901760
    %v1876 = vsub.f32 %v87, %v1875
    %v1877 = vand.u32 %v1876, 4294901760
    %1878 = vmatpush1.xpose.msra.mxu0 %v1877
    %1879 = vmatprep.subr.mxu0 0.0
    %v1880 = vand.u32 %v90, 4294901760
    %v1881 = vsub.f32 %v90, %v1880
    %v1882 = vand.u32 %v1881, 4294901760
    %1883 = vmatpush1.xpose.msra.mxu0 %v1882
    %1884 = vmatprep.subr.mxu0 0.0
    %v1885 = vand.u32 %v93, 4294901760
    %v1886 = vsub.f32 %v93, %v1885
    %v1887 = vand.u32 %v1886, 4294901760
    %1888 = vmatpush1.xpose.msra.mxu0 %v1887
    %1889 = vmatprep.subr.mxu0 0.0
    %v1890 = vand.u32 %v96, 4294901760
    %v1891 = vsub.f32 %v96, %v1890
    %v1892 = vand.u32 %v1891, 4294901760
    %1893 = vmatpush1.xpose.msra.mxu0 %v1892
    %1894 = vmatprep.subr.mxu0 0.0
    %1895 = vmatpush1.xpose.msra.mxu0 0.0
    %1896 = vmatprep.subr.mxu0 0.0
    %1897 = vmatpush1.xpose.msra.mxu0 0.0
    %1898 = vmatprep.subr.mxu0 0.0
    %1899 = vmatpush1.xpose.msra.mxu0 0.0
    %1900 = vmatprep.subr.mxu0 0.0
    %1901 = vmatpush1.xpose.msra.mxu0 0.0
    %1902 = vmatprep.subr.mxu0 0.0
    %1903 = vmatpush1.xpose.msra.mxu0 0.0
    %1904 = vmatprep.subr.mxu0 0.0
    %1905 = vmatpush1.xpose.msra.mxu0 0.0
    %1906 = vmatprep.subr.mxu0 0.0
    %1907 = vmatpush1.xpose.msra.mxu0 0.0
    %1908 = vmatprep.subr.mxu0 0.0
    %1909 = vmatpush1.xpose.msra.mxu0 0.0
    %1910 = vmatprep.subr.mxu0 0.0
    %1911 = vmatpush1.xpose.msra.mxu0 0.0
    %1912 = vmatprep.subr.mxu0 0.0
    %1913 = vmatpush1.xpose.msra.mxu0 0.0
    %1914 = vmatprep.subr.mxu0 0.0
    %1915 = vmatpush1.xpose.msra.mxu0 0.0
    %1916 = vmatprep.subr.mxu0 0.0
    %1917 = vmatpush1.xpose.msra.mxu0 0.0
    %1918 = vmatprep.subr.mxu0 0.0
    %1919 = vmatpush1.xpose.msra.mxu0 0.0
    %1920 = vmatprep.subr.mxu0 0.0
    %1921 = vmatpush1.xpose.msra.mxu0 0.0
    %1922 = vmatprep.subr.mxu0 0.0
    %1923 = vmatpush1.xpose.msra.mxu0 0.0
    %1924 = vmatprep.subr.mxu0 0.0
    %1925 = vmatpush1.xpose.msra.mxu0 0.0
    %1926 = vmatprep.subr.mxu0 0.0
    %1927 = vmatpush1.xpose.msra.mxu0 0.0
    %1928 = vmatprep.subr.mxu0 0.0
    %1929 = vmatpush1.xpose.msra.mxu0 0.0
    %1930 = vmatprep.subr.mxu0 0.0
    %1931 = vmatpush1.xpose.msra.mxu0 0.0
    %1932 = vmatprep.subr.mxu0 0.0
    %1933 = vmatpush1.xpose.msra.mxu0 0.0
    %1934 = vmatprep.mubr.f32.mxu0 0.0
    %v1935 = vand.u32 %v731, 4294901760
    %1936 = vmatmul.mubr.f32.gmra.mrb[0].mxu0 %v1935
    %v1937 = vpop.f32.mrb[0].mxu0
    %v1938 = vadd.f32 %v1823, %v1937
    %v1939 = vpop.f32.mrb[0].mxu0
    %1940 = vmatprep.mubr.f32.mxu0 0.0
    %v1941 = vand.u32 %v734, 4294901760
    %1942 = vmatmul.mubr.f32.gmra.mrb[0].mxu0 %v1941
    %v1943 = vpop.f32.mrb[0].mxu0
    %v1944 = vadd.f32 %v1831, %v1943
    %v1945 = vpop.f32.mrb[0].mxu0
    %1946 = vdwg.mxu0
    %1947 = vmatprep.subr.mxu0 0.0
    %v1948 = vand.u32 %v63, 4294901760
    %1949 = vmatpush1.xpose.msra.mxu0 %v1948
    %1950 = vmatprep.subr.mxu0 0.0
    %v1951 = vand.u32 %v66, 4294901760
    %1952 = vmatpush1.xpose.msra.mxu0 %v1951
    %1953 = vmatprep.subr.mxu0 0.0
    %v1954 = vand.u32 %v69, 4294901760
    %1955 = vmatpush1.xpose.msra.mxu0 %v1954
    %1956 = vmatprep.subr.mxu0 0.0
    %v1957 = vand.u32 %v72, 4294901760
    %1958 = vmatpush1.xpose.msra.mxu0 %v1957
    %1959 = vmatprep.subr.mxu0 0.0
    %v1960 = vand.u32 %v75, 4294901760
    %1961 = vmatpush1.xpose.msra.mxu0 %v1960
    %1962 = vmatprep.subr.mxu0 0.0
    %v1963 = vand.u32 %v78, 4294901760
    %1964 = vmatpush1.xpose.msra.mxu0 %v1963
    %1965 = vmatprep.subr.mxu0 0.0
    %v1966 = vand.u32 %v81, 4294901760
    %1967 = vmatpush1.xpose.msra.mxu0 %v1966
    %1968 = vmatprep.subr.mxu0 0.0
    %v1969 = vand.u32 %v84, 4294901760
    %1970 = vmatpush1.xpose.msra.mxu0 %v1969
    %1971 = vmatprep.subr.mxu0 0.0
    %v1972 = vand.u32 %v87, 4294901760
    %1973 = vmatpush1.xpose.msra.mxu0 %v1972
    %1974 = vmatprep.subr.mxu0 0.0
    %v1975 = vand.u32 %v90, 4294901760
    %1976 = vmatpush1.xpose.msra.mxu0 %v1975
    %1977 = vmatprep.subr.mxu0 0.0
    %v1978 = vand.u32 %v93, 4294901760
    %1979 = vmatpush1.xpose.msra.mxu0 %v1978
    %1980 = vmatprep.subr.mxu0 0.0
    %v1981 = vand.u32 %v96, 4294901760
    %1982 = vmatpush1.xpose.msra.mxu0 %v1981
    %1983 = vmatprep.subr.mxu0 0.0
    %1984 = vmatpush1.xpose.msra.mxu0 0.0
    %1985 = vmatprep.subr.mxu0 0.0
    %1986 = vmatpush1.xpose.msra.mxu0 0.0
    %1987 = vmatprep.subr.mxu0 0.0
    %1988 = vmatpush1.xpose.msra.mxu0 0.0
    %1989 = vmatprep.subr.mxu0 0.0
    %1990 = vmatpush1.xpose.msra.mxu0 0.0
    %1991 = vmatprep.subr.mxu0 0.0
    %1992 = vmatpush1.xpose.msra.mxu0 0.0
    %1993 = vmatprep.subr.mxu0 0.0
    %1994 = vmatpush1.xpose.msra.mxu0 0.0
    %1995 = vmatprep.subr.mxu0 0.0
    %1996 = vmatpush1.xpose.msra.mxu0 0.0
    %1997 = vmatprep.subr.mxu0 0.0
    %1998 = vmatpush1.xpose.msra.mxu0 0.0
    %1999 = vmatprep.subr.mxu0 0.0
    %2000 = vmatpush1.xpose.msra.mxu0 0.0
    %2001 = vmatprep.subr.mxu0 0.0
    %2002 = vmatpush1.xpose.msra.mxu0 0.0
    %2003 = vmatprep.subr.mxu0 0.0
    %2004 = vmatpush1.xpose.msra.mxu0 0.0
    %2005 = vmatprep.subr.mxu0 0.0
    %2006 = vmatpush1.xpose.msra.mxu0 0.0
    %2007 = vmatprep.subr.mxu0 0.0
    %2008 = vmatpush1.xpose.msra.mxu0 0.0
    %2009 = vmatprep.subr.mxu0 0.0
    %2010 = vmatpush1.xpose.msra.mxu0 0.0
    %2011 = vmatprep.subr.mxu0 0.0
    %2012 = vmatpush1.xpose.msra.mxu0 0.0
    %2013 = vmatprep.subr.mxu0 0.0
    %2014 = vmatpush1.xpose.msra.mxu0 0.0
    %2015 = vmatprep.subr.mxu0 0.0
    %2016 = vmatpush1.xpose.msra.mxu0 0.0
    %2017 = vmatprep.subr.mxu0 0.0
    %2018 = vmatpush1.xpose.msra.mxu0 0.0
    %2019 = vmatprep.subr.mxu0 0.0
    %2020 = vmatpush1.xpose.msra.mxu0 0.0
    %2021 = vmatprep.subr.mxu0 0.0
    %2022 = vmatpush1.xpose.msra.mxu0 0.0
    %2023 = vmatprep.mubr.f32.mxu0 0.0
    %v2024 = vand.u32 %v731, 4294901760
    %2025 = vmatmul.mubr.f32.gmra.mrb[0].mxu0 %v2024
    %v2026 = vpop.f32.mrb[0].mxu0
    %v2027 = vadd.f32 %v1938, %v2026
    %v2028 = vpop.f32.mrb[0].mxu0
    %2029 = vmatprep.mubr.f32.mxu0 0.0
    %v2030 = vand.u32 %v734, 4294901760
    %2031 = vmatmul.mubr.f32.gmra.mrb[0].mxu0 %v2030
    %v2032 = vpop.f32.mrb[0].mxu0
    %v2033 = vadd.f32 %v1944, %v2032
    %v2034 = vpop.f32.mrb[0].mxu0
    %2035 = vdwg.mxu0
    %v2036 = vsub.f32 %v721, %v1395
    %v2037 = vsub.f32 %v727, %v1401
    %v2038 = vld [vmem:[%s4] sm:$0x1]
    %v2040 = vlaneseq
    %v2041 = vshrl.u32 %v2040, 7
    %v2042 = vsub.s32 0, %v2041
    %v2043 = vrot.slane %v2038, %v2042
    %v2045 = vadd.f32 %v2036, %v2043
    %v2046 = vadd.f32 %v2037, %v2043
    %vm2047 = vcmask 785408
    %2048 = vst.msk [vmem:[#allocation2] sm:$0xff] %vm2047, %v2045
    %2049 = vst.msk [vmem:[#allocation2 + $0x8] sm:$0xff] %vm2047, %v2046
    %2050 = vmatprep.subr.mxu0 0.0
    %v2051 = vand.u32 %v737, 4294901760
    %2052 = vmatpush1.xpose.msra.mxu0 %v2051
    %2053 = vmatprep.subr.mxu0 0.0
    %v2054 = vand.u32 %v740, 4294901760
    %2055 = vmatpush1.xpose.msra.mxu0 %v2054
    %2056 = vmatprep.subr.mxu0 0.0
    %v2057 = vand.u32 %v743, 4294901760
    %2058 = vmatpush1.xpose.msra.mxu0 %v2057
    %2059 = vmatprep.subr.mxu0 0.0
    %v2060 = vand.u32 %v746, 4294901760
    %2061 = vmatpush1.xpose.msra.mxu0 %v2060
    %2062 = vmatprep.subr.mxu0 0.0
    %v2063 = vand.u32 %v749, 4294901760
    %2064 = vmatpush1.xpose.msra.mxu0 %v2063
    %2065 = vmatprep.subr.mxu0 0.0
    %v2066 = vand.u32 %v752, 4294901760
    %2067 = vmatpush1.xpose.msra.mxu0 %v2066
    %2068 = vmatprep.subr.mxu0 0.0
    %v2069 = vand.u32 %v755, 4294901760
    %2070 = vmatpush1.xpose.msra.mxu0 %v2069
    %2071 = vmatprep.subr.mxu0 0.0
    %v2072 = vand.u32 %v758, 4294901760
    %2073 = vmatpush1.xpose.msra.mxu0 %v2072
    %2074 = vmatprep.subr.mxu0 0.0
    %v2075 = vand.u32 %v761, 4294901760
    %2076 = vmatpush1.xpose.msra.mxu0 %v2075
    %2077 = vmatprep.subr.mxu0 0.0
    %v2078 = vand.u32 %v764, 4294901760
    %2079 = vmatpush1.xpose.msra.mxu0 %v2078
    %2080 = vmatprep.subr.mxu0 0.0
    %v2081 = vand.u32 %v767, 4294901760
    %2082 = vmatpush1.xpose.msra.mxu0 %v2081
    %2083 = vmatprep.subr.mxu0 0.0
    %v2084 = vand.u32 %v770, 4294901760
    %2085 = vmatpush1.xpose.msra.mxu0 %v2084
    %2086 = vmatprep.subr.mxu0 0.0
    %2087 = vmatpush1.xpose.msra.mxu0 0.0
    %2088 = vmatprep.subr.mxu0 0.0
    %2089 = vmatpush1.xpose.msra.mxu0 0.0
    %2090 = vmatprep.subr.mxu0 0.0
    %2091 = vmatpush1.xpose.msra.mxu0 0.0
    %2092 = vmatprep.subr.mxu0 0.0
    %2093 = vmatpush1.xpose.msra.mxu0 0.0
    %2094 = vmatprep.subr.mxu0 0.0
    %2095 = vmatpush1.xpose.msra.mxu0 0.0
    %2096 = vmatprep.subr.mxu0 0.0
    %2097 = vmatpush1.xpose.msra.mxu0 0.0
    %2098 = vmatprep.subr.mxu0 0.0
    %2099 = vmatpush1.xpose.msra.mxu0 0.0
    %2100 = vmatprep.subr.mxu0 0.0
    %2101 = vmatpush1.xpose.msra.mxu0 0.0
    %2102 = vmatprep.subr.mxu0 0.0
    %2103 = vmatpush1.xpose.msra.mxu0 0.0
    %2104 = vmatprep.subr.mxu0 0.0
    %2105 = vmatpush1.xpose.msra.mxu0 0.0
    %2106 = vmatprep.subr.mxu0 0.0
    %2107 = vmatpush1.xpose.msra.mxu0 0.0
    %2108 = vmatprep.subr.mxu0 0.0
    %2109 = vmatpush1.xpose.msra.mxu0 0.0
    %2110 = vmatprep.subr.mxu0 0.0
    %2111 = vmatpush1.xpose.msra.mxu0 0.0
    %2112 = vmatprep.subr.mxu0 0.0
    %2113 = vmatpush1.xpose.msra.mxu0 0.0
    %2114 = vmatprep.subr.mxu0 0.0
    %2115 = vmatpush1.xpose.msra.mxu0 0.0
    %2116 = vmatprep.subr.mxu0 0.0
    %2117 = vmatpush1.xpose.msra.mxu0 0.0
    %2118 = vmatprep.subr.mxu0 0.0
    %2119 = vmatpush1.xpose.msra.mxu0 0.0
    %2120 = vmatprep.subr.mxu0 0.0
    %2121 = vmatpush1.xpose.msra.mxu0 0.0
    %2122 = vmatprep.subr.mxu0 0.0
    %2123 = vmatpush1.xpose.msra.mxu0 0.0
    %2124 = vmatprep.subr.mxu0 0.0
    %2125 = vmatpush1.xpose.msra.mxu0 0.0
    %2126 = vmatprep.mubr.f32.mxu0 0.0
    %v2127 = vand.u32 %v57, 4294901760
    %v2128 = vsub.f32 %v57, %v2127
    %v2129 = vand.u32 %v2128, 4294901760
    %v2130 = vsub.f32 %v2128, %v2129
    %v2131 = vand.u32 %v2130, 4294901760
    %2132 = vmatmul.mubr.f32.gmra.mrb[0].mxu0 %v2131
    %v2133 = vpop.f32.mrb[0].mxu0
    %v2134 = vadd.f32 %v2027, %v2133
    %v2135 = vpop.f32.mrb[0].mxu0
    %2136 = vmatprep.mubr.f32.mxu0 0.0
    %v2137 = vand.u32 %v60, 4294901760
    %v2138 = vsub.f32 %v60, %v2137
    %v2139 = vand.u32 %v2138, 4294901760
    %v2140 = vsub.f32 %v2138, %v2139
    %v2141 = vand.u32 %v2140, 4294901760
    %2142 = vmatmul.mubr.f32.gmra.mrb[0].mxu0 %v2141
    %v2143 = vpop.f32.mrb[0].mxu0
    %v2144 = vadd.f32 %v2033, %v2143
    %v2145 = vpop.f32.mrb[0].mxu0
    %2146 = vdwg.mxu0
    %2147 = vmatprep.subr.mxu0 0.0
    %v2148 = vand.u32 %v737, 4294901760
    %v2149 = vsub.f32 %v737, %v2148
    %v2150 = vand.u32 %v2149, 4294901760
    %v2151 = vsub.f32 %v2149, %v2150
    %v2152 = vand.u32 %v2151, 4294901760
    %2153 = vmatpush1.xpose.msra.mxu0 %v2152
    %2154 = vmatprep.subr.mxu0 0.0
    %v2155 = vand.u32 %v740, 4294901760
    %v2156 = vsub.f32 %v740, %v2155
    %v2157 = vand.u32 %v2156, 4294901760
    %v2158 = vsub.f32 %v2156, %v2157
    %v2159 = vand.u32 %v2158, 4294901760
    %2160 = vmatpush1.xpose.msra.mxu0 %v2159
    %2161 = vmatprep.subr.mxu0 0.0
    %v2162 = vand.u32 %v743, 4294901760
    %v2163 = vsub.f32 %v743, %v2162
    %v2164 = vand.u32 %v2163, 4294901760
    %v2165 = vsub.f32 %v2163, %v2164
    %v2166 = vand.u32 %v2165, 4294901760
    %2167 = vmatpush1.xpose.msra.mxu0 %v2166
    %2168 = vmatprep.subr.mxu0 0.0
    %v2169 = vand.u32 %v746, 4294901760
    %v2170 = vsub.f32 %v746, %v2169
    %v2171 = vand.u32 %v2170, 4294901760
    %v2172 = vsub.f32 %v2170, %v2171
    %v2173 = vand.u32 %v2172, 4294901760
    %2174 = vmatpush1.xpose.msra.mxu0 %v2173
    %2175 = vmatprep.subr.mxu0 0.0
    %v2176 = vand.u32 %v749, 4294901760
    %v2177 = vsub.f32 %v749, %v2176
    %v2178 = vand.u32 %v2177, 4294901760
    %v2179 = vsub.f32 %v2177, %v2178
    %v2180 = vand.u32 %v2179, 4294901760
    %2181 = vmatpush1.xpose.msra.mxu0 %v2180
    %2182 = vmatprep.subr.mxu0 0.0
    %v2183 = vand.u32 %v752, 4294901760
    %v2184 = vsub.f32 %v752, %v2183
    %v2185 = vand.u32 %v2184, 4294901760
    %v2186 = vsub.f32 %v2184, %v2185
    %v2187 = vand.u32 %v2186, 4294901760
    %2188 = vmatpush1.xpose.msra.mxu0 %v2187
    %2189 = vmatprep.subr.mxu0 0.0
    %v2190 = vand.u32 %v755, 4294901760
    %v2191 = vsub.f32 %v755, %v2190
    %v2192 = vand.u32 %v2191, 4294901760
    %v2193 = vsub.f32 %v2191, %v2192
    %v2194 = vand.u32 %v2193, 4294901760
    %2195 = vmatpush1.xpose.msra.mxu0 %v2194
    %2196 = vmatprep.subr.mxu0 0.0
    %v2197 = vand.u32 %v758, 4294901760
    %v2198 = vsub.f32 %v758, %v2197
    %v2199 = vand.u32 %v2198, 4294901760
    %v2200 = vsub.f32 %v2198, %v2199
    %v2201 = vand.u32 %v2200, 4294901760
    %2202 = vmatpush1.xpose.msra.mxu0 %v2201
    %2203 = vmatprep.subr.mxu0 0.0
    %v2204 = vand.u32 %v761, 4294901760
    %v2205 = vsub.f32 %v761, %v2204
    %v2206 = vand.u32 %v2205, 4294901760
    %v2207 = vsub.f32 %v2205, %v2206
    %v2208 = vand.u32 %v2207, 4294901760
    %2209 = vmatpush1.xpose.msra.mxu0 %v2208
    %2210 = vmatprep.subr.mxu0 0.0
    %v2211 = vand.u32 %v764, 4294901760
    %v2212 = vsub.f32 %v764, %v2211
    %v2213 = vand.u32 %v2212, 4294901760
    %v2214 = vsub.f32 %v2212, %v2213
    %v2215 = vand.u32 %v2214, 4294901760
    %2216 = vmatpush1.xpose.msra.mxu0 %v2215
    %2217 = vmatprep.subr.mxu0 0.0
    %v2218 = vand.u32 %v767, 4294901760
    %v2219 = vsub.f32 %v767, %v2218
    %v2220 = vand.u32 %v2219, 4294901760
    %v2221 = vsub.f32 %v2219, %v2220
    %v2222 = vand.u32 %v2221, 4294901760
    %2223 = vmatpush1.xpose.msra.mxu0 %v2222
    %2224 = vmatprep.subr.mxu0 0.0
    %v2225 = vand.u32 %v770, 4294901760
    %v2226 = vsub.f32 %v770, %v2225
    %v2227 = vand.u32 %v2226, 4294901760
    %v2228 = vsub.f32 %v2226, %v2227
    %v2229 = vand.u32 %v2228, 4294901760
    %2230 = vmatpush1.xpose.msra.mxu0 %v2229
    %2231 = vmatprep.subr.mxu0 0.0
    %2232 = vmatpush1.xpose.msra.mxu0 0.0
    %2233 = vmatprep.subr.mxu0 0.0
    %2234 = vmatpush1.xpose.msra.mxu0 0.0
    %2235 = vmatprep.subr.mxu0 0.0
    %2236 = vmatpush1.xpose.msra.mxu0 0.0
    %2237 = vmatprep.subr.mxu0 0.0
    %2238 = vmatpush1.xpose.msra.mxu0 0.0
    %2239 = vmatprep.subr.mxu0 0.0
    %2240 = vmatpush1.xpose.msra.mxu0 0.0
    %2241 = vmatprep.subr.mxu0 0.0
    %2242 = vmatpush1.xpose.msra.mxu0 0.0
    %2243 = vmatprep.subr.mxu0 0.0
    %2244 = vmatpush1.xpose.msra.mxu0 0.0
    %2245 = vmatprep.subr.mxu0 0.0
    %2246 = vmatpush1.xpose.msra.mxu0 0.0
    %2247 = vmatprep.subr.mxu0 0.0
    %2248 = vmatpush1.xpose.msra.mxu0 0.0
    %2249 = vmatprep.subr.mxu0 0.0
    %2250 = vmatpush1.xpose.msra.mxu0 0.0
    %2251 = vmatprep.subr.mxu0 0.0
    %2252 = vmatpush1.xpose.msra.mxu0 0.0
    %2253 = vmatprep.subr.mxu0 0.0
    %2254 = vmatpush1.xpose.msra.mxu0 0.0
    %2255 = vmatprep.subr.mxu0 0.0
    %2256 = vmatpush1.xpose.msra.mxu0 0.0
    %2257 = vmatprep.subr.mxu0 0.0
    %2258 = vmatpush1.xpose.msra.mxu0 0.0
    %2259 = vmatprep.subr.mxu0 0.0
    %2260 = vmatpush1.xpose.msra.mxu0 0.0
    %2261 = vmatprep.subr.mxu0 0.0
    %2262 = vmatpush1.xpose.msra.mxu0 0.0
    %2263 = vmatprep.subr.mxu0 0.0
    %2264 = vmatpush1.xpose.msra.mxu0 0.0
    %2265 = vmatprep.subr.mxu0 0.0
    %2266 = vmatpush1.xpose.msra.mxu0 0.0
    %2267 = vmatprep.subr.mxu0 0.0
    %2268 = vmatpush1.xpose.msra.mxu0 0.0
    %2269 = vmatprep.subr.mxu0 0.0
    %2270 = vmatpush1.xpose.msra.mxu0 0.0
    %2271 = vmatprep.mubr.f32.mxu0 0.0
    %v2272 = vand.u32 %v57, 4294901760
    %2273 = vmatmul.mubr.f32.gmra.mrb[0].mxu0 %v2272
    %v2274 = vpop.f32.mrb[0].mxu0
    %v2275 = vadd.f32 %v2134, %v2274
    %v2276 = vpop.f32.mrb[0].mxu0
    %2277 = vmatprep.mubr.f32.mxu0 0.0
    %v2278 = vand.u32 %v60, 4294901760
    %2279 = vmatmul.mubr.f32.gmra.mrb[0].mxu0 %v2278
    %v2280 = vpop.f32.mrb[0].mxu0
    %v2281 = vadd.f32 %v2144, %v2280
    %v2282 = vpop.f32.mrb[0].mxu0
    %2283 = vdwg.mxu0
    %2284 = vmatprep.subr.mxu0 0.0
    %v2285 = vand.u32 %v737, 4294901760
    %v2286 = vsub.f32 %v737, %v2285
    %2287 = vmatpush1.xpose.msra.mxu0 %v2286
    %2288 = vmatprep.subr.mxu0 0.0
    %v2289 = vand.u32 %v740, 4294901760
    %v2290 = vsub.f32 %v740, %v2289
    %2291 = vmatpush1.xpose.msra.mxu0 %v2290
    %2292 = vmatprep.subr.mxu0 0.0
    %v2293 = vand.u32 %v743, 4294901760
    %v2294 = vsub.f32 %v743, %v2293
    %2295 = vmatpush1.xpose.msra.mxu0 %v2294
    %2296 = vmatprep.subr.mxu0 0.0
    %v2297 = vand.u32 %v746, 4294901760
    %v2298 = vsub.f32 %v746, %v2297
    %2299 = vmatpush1.xpose.msra.mxu0 %v2298
    %2300 = vmatprep.subr.mxu0 0.0
    %v2301 = vand.u32 %v749, 4294901760
    %v2302 = vsub.f32 %v749, %v2301
    %2303 = vmatpush1.xpose.msra.mxu0 %v2302
    %2304 = vmatprep.subr.mxu0 0.0
    %v2305 = vand.u32 %v752, 4294901760
    %v2306 = vsub.f32 %v752, %v2305
    %2307 = vmatpush1.xpose.msra.mxu0 %v2306
    %2308 = vmatprep.subr.mxu0 0.0
    %v2309 = vand.u32 %v755, 4294901760
    %v2310 = vsub.f32 %v755, %v2309
    %2311 = vmatpush1.xpose.msra.mxu0 %v2310
    %2312 = vmatprep.subr.mxu0 0.0
    %v2313 = vand.u32 %v758, 4294901760
    %v2314 = vsub.f32 %v758, %v2313
    %2315 = vmatpush1.xpose.msra.mxu0 %v2314
    %2316 = vmatprep.subr.mxu0 0.0
    %v2317 = vand.u32 %v761, 4294901760
    %v2318 = vsub.f32 %v761, %v2317
    %2319 = vmatpush1.xpose.msra.mxu0 %v2318
    %2320 = vmatprep.subr.mxu0 0.0
    %v2321 = vand.u32 %v764, 4294901760
    %v2322 = vsub.f32 %v764, %v2321
    %2323 = vmatpush1.xpose.msra.mxu0 %v2322
    %2324 = vmatprep.subr.mxu0 0.0
    %v2325 = vand.u32 %v767, 4294901760
    %v2326 = vsub.f32 %v767, %v2325
    %2327 = vmatpush1.xpose.msra.mxu0 %v2326
    %2328 = vmatprep.subr.mxu0 0.0
    %v2329 = vand.u32 %v770, 4294901760
    %v2330 = vsub.f32 %v770, %v2329
    %2331 = vmatpush1.xpose.msra.mxu0 %v2330
    %2332 = vmatprep.subr.mxu0 0.0
    %2333 = vmatpush1.xpose.msra.mxu0 0.0
    %2334 = vmatprep.subr.mxu0 0.0
    %2335 = vmatpush1.xpose.msra.mxu0 0.0
    %2336 = vmatprep.subr.mxu0 0.0
    %2337 = vmatpush1.xpose.msra.mxu0 0.0
    %2338 = vmatprep.subr.mxu0 0.0
    %2339 = vmatpush1.xpose.msra.mxu0 0.0
    %2340 = vmatprep.subr.mxu0 0.0
    %2341 = vmatpush1.xpose.msra.mxu0 0.0
    %2342 = vmatprep.subr.mxu0 0.0
    %2343 = vmatpush1.xpose.msra.mxu0 0.0
    %2344 = vmatprep.subr.mxu0 0.0
    %2345 = vmatpush1.xpose.msra.mxu0 0.0
    %2346 = vmatprep.subr.mxu0 0.0
    %2347 = vmatpush1.xpose.msra.mxu0 0.0
    %2348 = vmatprep.subr.mxu0 0.0
    %2349 = vmatpush1.xpose.msra.mxu0 0.0
    %2350 = vmatprep.subr.mxu0 0.0
    %2351 = vmatpush1.xpose.msra.mxu0 0.0
    %2352 = vmatprep.subr.mxu0 0.0
    %2353 = vmatpush1.xpose.msra.mxu0 0.0
    %2354 = vmatprep.subr.mxu0 0.0
    %2355 = vmatpush1.xpose.msra.mxu0 0.0
    %2356 = vmatprep.subr.mxu0 0.0
    %2357 = vmatpush1.xpose.msra.mxu0 0.0
    %2358 = vmatprep.subr.mxu0 0.0
    %2359 = vmatpush1.xpose.msra.mxu0 0.0
    %2360 = vmatprep.subr.mxu0 0.0
    %2361 = vmatpush1.xpose.msra.mxu0 0.0
    %2362 = vmatprep.subr.mxu0 0.0
    %2363 = vmatpush1.xpose.msra.mxu0 0.0
    %2364 = vmatprep.subr.mxu0 0.0
    %2365 = vmatpush1.xpose.msra.mxu0 0.0
    %2366 = vmatprep.subr.mxu0 0.0
    %2367 = vmatpush1.xpose.msra.mxu0 0.0
    %2368 = vmatprep.subr.mxu0 0.0
    %2369 = vmatpush1.xpose.msra.mxu0 0.0
    %2370 = vmatprep.subr.mxu0 0.0
    %2371 = vmatpush1.xpose.msra.mxu0 0.0
    %2372 = vmatprep.mubr.f32.mxu0 0.0
    %v2373 = vand.u32 %v57, 4294901760
    %v2374 = vsub.f32 %v57, %v2373
    %2375 = vmatmul.mubr.f32.gmra.mrb[0].mxu0 %v2374
    %v2376 = vpop.f32.mrb[0].mxu0
    %v2377 = vadd.f32 %v2275, %v2376
    %v2378 = vpop.f32.mrb[0].mxu0
    %2379 = vmatprep.mubr.f32.mxu0 0.0
    %v2380 = vand.u32 %v60, 4294901760
    %v2381 = vsub.f32 %v60, %v2380
    %2382 = vmatmul.mubr.f32.gmra.mrb[0].mxu0 %v2381
    %v2383 = vpop.f32.mrb[0].mxu0
    %v2384 = vadd.f32 %v2281, %v2383
    %v2385 = vpop.f32.mrb[0].mxu0
    %2386 = vdwg.mxu0
    %2387 = vmatprep.subr.mxu0 0.0
    %v2388 = vand.u32 %v737, 4294901760
    %2389 = vmatpush1.xpose.msra.mxu0 %v2388
    %2390 = vmatprep.subr.mxu0 0.0
    %v2391 = vand.u32 %v740, 4294901760
    %2392 = vmatpush1.xpose.msra.mxu0 %v2391
    %2393 = vmatprep.subr.mxu0 0.0
    %v2394 = vand.u32 %v743, 4294901760
    %2395 = vmatpush1.xpose.msra.mxu0 %v2394
    %2396 = vmatprep.subr.mxu0 0.0
    %v2397 = vand.u32 %v746, 4294901760
    %2398 = vmatpush1.xpose.msra.mxu0 %v2397
    %2399 = vmatprep.subr.mxu0 0.0
    %v2400 = vand.u32 %v749, 4294901760
    %2401 = vmatpush1.xpose.msra.mxu0 %v2400
    %2402 = vmatprep.subr.mxu0 0.0
    %v2403 = vand.u32 %v752, 4294901760
    %2404 = vmatpush1.xpose.msra.mxu0 %v2403
    %2405 = vmatprep.subr.mxu0 0.0
    %v2406 = vand.u32 %v755, 4294901760
    %2407 = vmatpush1.xpose.msra.mxu0 %v2406
    %2408 = vmatprep.subr.mxu0 0.0
    %v2409 = vand.u32 %v758, 4294901760
    %2410 = vmatpush1.xpose.msra.mxu0 %v2409
    %2411 = vmatprep.subr.mxu0 0.0
    %v2412 = vand.u32 %v761, 4294901760
    %2413 = vmatpush1.xpose.msra.mxu0 %v2412
    %2414 = vmatprep.subr.mxu0 0.0
    %v2415 = vand.u32 %v764, 4294901760
    %2416 = vmatpush1.xpose.msra.mxu0 %v2415
    %2417 = vmatprep.subr.mxu0 0.0
    %v2418 = vand.u32 %v767, 4294901760
    %2419 = vmatpush1.xpose.msra.mxu0 %v2418
    %2420 = vmatprep.subr.mxu0 0.0
    %v2421 = vand.u32 %v770, 4294901760
    %2422 = vmatpush1.xpose.msra.mxu0 %v2421
    %2423 = vmatprep.subr.mxu0 0.0
    %2424 = vmatpush1.xpose.msra.mxu0 0.0
    %2425 = vmatprep.subr.mxu0 0.0
    %2426 = vmatpush1.xpose.msra.mxu0 0.0
    %2427 = vmatprep.subr.mxu0 0.0
    %2428 = vmatpush1.xpose.msra.mxu0 0.0
    %2429 = vmatprep.subr.mxu0 0.0
    %2430 = vmatpush1.xpose.msra.mxu0 0.0
    %2431 = vmatprep.subr.mxu0 0.0
    %2432 = vmatpush1.xpose.msra.mxu0 0.0
    %2433 = vmatprep.subr.mxu0 0.0
    %2434 = vmatpush1.xpose.msra.mxu0 0.0
    %2435 = vmatprep.subr.mxu0 0.0
    %2436 = vmatpush1.xpose.msra.mxu0 0.0
    %2437 = vmatprep.subr.mxu0 0.0
    %2438 = vmatpush1.xpose.msra.mxu0 0.0
    %2439 = vmatprep.subr.mxu0 0.0
    %2440 = vmatpush1.xpose.msra.mxu0 0.0
    %2441 = vmatprep.subr.mxu0 0.0
    %2442 = vmatpush1.xpose.msra.mxu0 0.0
    %2443 = vmatprep.subr.mxu0 0.0
    %2444 = vmatpush1.xpose.msra.mxu0 0.0
    %2445 = vmatprep.subr.mxu0 0.0
    %2446 = vmatpush1.xpose.msra.mxu0 0.0
    %2447 = vmatprep.subr.mxu0 0.0
    %2448 = vmatpush1.xpose.msra.mxu0 0.0
    %2449 = vmatprep.subr.mxu0 0.0
    %2450 = vmatpush1.xpose.msra.mxu0 0.0
    %2451 = vmatprep.subr.mxu0 0.0
    %2452 = vmatpush1.xpose.msra.mxu0 0.0
    %2453 = vmatprep.subr.mxu0 0.0
    %2454 = vmatpush1.xpose.msra.mxu0 0.0
    %2455 = vmatprep.subr.mxu0 0.0
    %2456 = vmatpush1.xpose.msra.mxu0 0.0
    %2457 = vmatprep.subr.mxu0 0.0
    %2458 = vmatpush1.xpose.msra.mxu0 0.0
    %2459 = vmatprep.subr.mxu0 0.0
    %2460 = vmatpush1.xpose.msra.mxu0 0.0
    %2461 = vmatprep.subr.mxu0 0.0
    %2462 = vmatpush1.xpose.msra.mxu0 0.0
    %2463 = vmatprep.mubr.f32.mxu0 0.0
    %v2464 = vand.u32 %v57, 4294901760
    %v2465 = vsub.f32 %v57, %v2464
    %v2466 = vand.u32 %v2465, 4294901760
    %2467 = vmatmul.mubr.f32.gmra.mrb[0].mxu0 %v2466
    %v2468 = vpop.f32.mrb[0].mxu0
    %v2469 = vadd.f32 %v2377, %v2468
    %v2470 = vpop.f32.mrb[0].mxu0
    %2471 = vmatprep.mubr.f32.mxu0 0.0
    %v2472 = vand.u32 %v60, 4294901760
    %v2473 = vsub.f32 %v60, %v2472
    %v2474 = vand.u32 %v2473, 4294901760
    %2475 = vmatmul.mubr.f32.gmra.mrb[0].mxu0 %v2474
    %v2476 = vpop.f32.mrb[0].mxu0
    %v2477 = vadd.f32 %v2384, %v2476
    %v2478 = vpop.f32.mrb[0].mxu0
    %2479 = vdwg.mxu0
    %2480 = vmatprep.subr.mxu0 0.0
    %v2481 = vand.u32 %v737, 4294901760
    %v2482 = vsub.f32 %v737, %v2481
    %v2483 = vand.u32 %v2482, 4294901760
    %2484 = vmatpush1.xpose.msra.mxu0 %v2483
    %2485 = vmatprep.subr.mxu0 0.0
    %v2486 = vand.u32 %v740, 4294901760
    %v2487 = vsub.f32 %v740, %v2486
    %v2488 = vand.u32 %v2487, 4294901760
    %2489 = vmatpush1.xpose.msra.mxu0 %v2488
    %2490 = vmatprep.subr.mxu0 0.0
    %v2491 = vand.u32 %v743, 4294901760
    %v2492 = vsub.f32 %v743, %v2491
    %v2493 = vand.u32 %v2492, 4294901760
    %2494 = vmatpush1.xpose.msra.mxu0 %v2493
    %2495 = vmatprep.subr.mxu0 0.0
    %v2496 = vand.u32 %v746, 4294901760
    %v2497 = vsub.f32 %v746, %v2496
    %v2498 = vand.u32 %v2497, 4294901760
    %2499 = vmatpush1.xpose.msra.mxu0 %v2498
    %2500 = vmatprep.subr.mxu0 0.0
    %v2501 = vand.u32 %v749, 4294901760
    %v2502 = vsub.f32 %v749, %v2501
    %v2503 = vand.u32 %v2502, 4294901760
    %2504 = vmatpush1.xpose.msra.mxu0 %v2503
    %2505 = vmatprep.subr.mxu0 0.0
    %v2506 = vand.u32 %v752, 4294901760
    %v2507 = vsub.f32 %v752, %v2506
    %v2508 = vand.u32 %v2507, 4294901760
    %2509 = vmatpush1.xpose.msra.mxu0 %v2508
    %2510 = vmatprep.subr.mxu0 0.0
    %v2511 = vand.u32 %v755, 4294901760
    %v2512 = vsub.f32 %v755, %v2511
    %v2513 = vand.u32 %v2512, 4294901760
    %2514 = vmatpush1.xpose.msra.mxu0 %v2513
    %2515 = vmatprep.subr.mxu0 0.0
    %v2516 = vand.u32 %v758, 4294901760
    %v2517 = vsub.f32 %v758, %v2516
    %v2518 = vand.u32 %v2517, 4294901760
    %2519 = vmatpush1.xpose.msra.mxu0 %v2518
    %2520 = vmatprep.subr.mxu0 0.0
    %v2521 = vand.u32 %v761, 4294901760
    %v2522 = vsub.f32 %v761, %v2521
    %v2523 = vand.u32 %v2522, 4294901760
    %2524 = vmatpush1.xpose.msra.mxu0 %v2523
    %2525 = vmatprep.subr.mxu0 0.0
    %v2526 = vand.u32 %v764, 4294901760
    %v2527 = vsub.f32 %v764, %v2526
    %v2528 = vand.u32 %v2527, 4294901760
    %2529 = vmatpush1.xpose.msra.mxu0 %v2528
    %2530 = vmatprep.subr.mxu0 0.0
    %v2531 = vand.u32 %v767, 4294901760
    %v2532 = vsub.f32 %v767, %v2531
    %v2533 = vand.u32 %v2532, 4294901760
    %2534 = vmatpush1.xpose.msra.mxu0 %v2533
    %2535 = vmatprep.subr.mxu0 0.0
    %v2536 = vand.u32 %v770, 4294901760
    %v2537 = vsub.f32 %v770, %v2536
    %v2538 = vand.u32 %v2537, 4294901760
    %2539 = vmatpush1.xpose.msra.mxu0 %v2538
    %2540 = vmatprep.subr.mxu0 0.0
    %2541 = vmatpush1.xpose.msra.mxu0 0.0
    %2542 = vmatprep.subr.mxu0 0.0
    %2543 = vmatpush1.xpose.msra.mxu0 0.0
    %2544 = vmatprep.subr.mxu0 0.0
    %2545 = vmatpush1.xpose.msra.mxu0 0.0
    %2546 = vmatprep.subr.mxu0 0.0
    %2547 = vmatpush1.xpose.msra.mxu0 0.0
    %2548 = vmatprep.subr.mxu0 0.0
    %2549 = vmatpush1.xpose.msra.mxu0 0.0
    %2550 = vmatprep.subr.mxu0 0.0
    %2551 = vmatpush1.xpose.msra.mxu0 0.0
    %2552 = vmatprep.subr.mxu0 0.0
    %2553 = vmatpush1.xpose.msra.mxu0 0.0
    %2554 = vmatprep.subr.mxu0 0.0
    %2555 = vmatpush1.xpose.msra.mxu0 0.0
    %2556 = vmatprep.subr.mxu0 0.0
    %2557 = vmatpush1.xpose.msra.mxu0 0.0
    %2558 = vmatprep.subr.mxu0 0.0
    %2559 = vmatpush1.xpose.msra.mxu0 0.0
    %2560 = vmatprep.subr.mxu0 0.0
    %2561 = vmatpush1.xpose.msra.mxu0 0.0
    %2562 = vmatprep.subr.mxu0 0.0
    %2563 = vmatpush1.xpose.msra.mxu0 0.0
    %2564 = vmatprep.subr.mxu0 0.0
    %2565 = vmatpush1.xpose.msra.mxu0 0.0
    %2566 = vmatprep.subr.mxu0 0.0
    %2567 = vmatpush1.xpose.msra.mxu0 0.0
    %2568 = vmatprep.subr.mxu0 0.0
    %2569 = vmatpush1.xpose.msra.mxu0 0.0
    %2570 = vmatprep.subr.mxu0 0.0
    %2571 = vmatpush1.xpose.msra.mxu0 0.0
    %2572 = vmatprep.subr.mxu0 0.0
    %2573 = vmatpush1.xpose.msra.mxu0 0.0
    %2574 = vmatprep.subr.mxu0 0.0
    %2575 = vmatpush1.xpose.msra.mxu0 0.0
    %2576 = vmatprep.subr.mxu0 0.0
    %2577 = vmatpush1.xpose.msra.mxu0 0.0
    %2578 = vmatprep.subr.mxu0 0.0
    %2579 = vmatpush1.xpose.msra.mxu0 0.0
    %2580 = vmatprep.mubr.f32.mxu0 0.0
    %v2581 = vand.u32 %v57, 4294901760
    %2582 = vmatmul.mubr.f32.gmra.mrb[0].mxu0 %v2581
    %v2583 = vpop.f32.mrb[0].mxu0
    %v2584 = vadd.f32 %v2469, %v2583
    %v2585 = vpop.f32.mrb[0].mxu0
    %2586 = vmatprep.mubr.f32.mxu0 0.0
    %v2587 = vand.u32 %v60, 4294901760
    %2588 = vmatmul.mubr.f32.gmra.mrb[0].mxu0 %v2587
    %v2589 = vpop.f32.mrb[0].mxu0
    %v2590 = vadd.f32 %v2477, %v2589
    %v2591 = vpop.f32.mrb[0].mxu0
    %2592 = vdwg.mxu0
    %2593 = vmatprep.subr.mxu0 0.0
    %v2594 = vand.u32 %v737, 4294901760
    %2595 = vmatpush1.xpose.msra.mxu0 %v2594
    %2596 = vmatprep.subr.mxu0 0.0
    %v2597 = vand.u32 %v740, 4294901760
    %2598 = vmatpush1.xpose.msra.mxu0 %v2597
    %2599 = vmatprep.subr.mxu0 0.0
    %v2600 = vand.u32 %v743, 4294901760
    %2601 = vmatpush1.xpose.msra.mxu0 %v2600
    %2602 = vmatprep.subr.mxu0 0.0
    %v2603 = vand.u32 %v746, 4294901760
    %2604 = vmatpush1.xpose.msra.mxu0 %v2603
    %2605 = vmatprep.subr.mxu0 0.0
    %v2606 = vand.u32 %v749, 4294901760
    %2607 = vmatpush1.xpose.msra.mxu0 %v2606
    %2608 = vmatprep.subr.mxu0 0.0
    %v2609 = vand.u32 %v752, 4294901760
    %2610 = vmatpush1.xpose.msra.mxu0 %v2609
    %2611 = vmatprep.subr.mxu0 0.0
    %v2612 = vand.u32 %v755, 4294901760
    %2613 = vmatpush1.xpose.msra.mxu0 %v2612
    %2614 = vmatprep.subr.mxu0 0.0
    %v2615 = vand.u32 %v758, 4294901760
    %2616 = vmatpush1.xpose.msra.mxu0 %v2615
    %2617 = vmatprep.subr.mxu0 0.0
    %v2618 = vand.u32 %v761, 4294901760
    %2619 = vmatpush1.xpose.msra.mxu0 %v2618
    %2620 = vmatprep.subr.mxu0 0.0
    %v2621 = vand.u32 %v764, 4294901760
    %2622 = vmatpush1.xpose.msra.mxu0 %v2621
    %2623 = vmatprep.subr.mxu0 0.0
    %v2624 = vand.u32 %v767, 4294901760
    %2625 = vmatpush1.xpose.msra.mxu0 %v2624
    %2626 = vmatprep.subr.mxu0 0.0
    %v2627 = vand.u32 %v770, 4294901760
    %2628 = vmatpush1.xpose.msra.mxu0 %v2627
    %2629 = vmatprep.subr.mxu0 0.0
    %2630 = vmatpush1.xpose.msra.mxu0 0.0
    %2631 = vmatprep.subr.mxu0 0.0
    %2632 = vmatpush1.xpose.msra.mxu0 0.0
    %2633 = vmatprep.subr.mxu0 0.0
    %2634 = vmatpush1.xpose.msra.mxu0 0.0
    %2635 = vmatprep.subr.mxu0 0.0
    %2636 = vmatpush1.xpose.msra.mxu0 0.0
    %2637 = vmatprep.subr.mxu0 0.0
    %2638 = vmatpush1.xpose.msra.mxu0 0.0
    %2639 = vmatprep.subr.mxu0 0.0
    %2640 = vmatpush1.xpose.msra.mxu0 0.0
    %2641 = vmatprep.subr.mxu0 0.0
    %2642 = vmatpush1.xpose.msra.mxu0 0.0
    %2643 = vmatprep.subr.mxu0 0.0
    %2644 = vmatpush1.xpose.msra.mxu0 0.0
    %2645 = vmatprep.subr.mxu0 0.0
    %2646 = vmatpush1.xpose.msra.mxu0 0.0
    %2647 = vmatprep.subr.mxu0 0.0
    %2648 = vmatpush1.xpose.msra.mxu0 0.0
    %2649 = vmatprep.subr.mxu0 0.0
    %2650 = vmatpush1.xpose.msra.mxu0 0.0
    %2651 = vmatprep.subr.mxu0 0.0
    %2652 = vmatpush1.xpose.msra.mxu0 0.0
    %2653 = vmatprep.subr.mxu0 0.0
    %2654 = vmatpush1.xpose.msra.mxu0 0.0
    %2655 = vmatprep.subr.mxu0 0.0
    %2656 = vmatpush1.xpose.msra.mxu0 0.0
    %2657 = vmatprep.subr.mxu0 0.0
    %2658 = vmatpush1.xpose.msra.mxu0 0.0
    %2659 = vmatprep.subr.mxu0 0.0
    %2660 = vmatpush1.xpose.msra.mxu0 0.0
    %2661 = vmatprep.subr.mxu0 0.0
    %2662 = vmatpush1.xpose.msra.mxu0 0.0
    %2663 = vmatprep.subr.mxu0 0.0
    %2664 = vmatpush1.xpose.msra.mxu0 0.0
    %2665 = vmatprep.subr.mxu0 0.0
    %2666 = vmatpush1.xpose.msra.mxu0 0.0
    %2667 = vmatprep.subr.mxu0 0.0
    %2668 = vmatpush1.xpose.msra.mxu0 0.0
    %2669 = vmatprep.mubr.f32.mxu0 0.0
    %v2670 = vand.u32 %v57, 4294901760
    %2671 = vmatmul.mubr.f32.gmra.mrb[0].mxu0 %v2670
    %v2672 = vpop.f32.mrb[0].mxu0
    %v2673 = vadd.f32 %v2584, %v2672
    %v2674 = vpop.f32.mrb[0].mxu0
    %2675 = vmatprep.mubr.f32.mxu0 0.0
    %v2676 = vand.u32 %v60, 4294901760
    %2677 = vmatmul.mubr.f32.gmra.mrb[0].mxu0 %v2676
    %v2678 = vpop.f32.mrb[0].mxu0
    %v2679 = vadd.f32 %v2590, %v2678
    %v2680 = vpop.f32.mrb[0].mxu0
    %2681 = vdwg.mxu0
    %v2682 = vld [vmem:[%s5] sm:$0x1]
    %v2684 = vlaneseq
    %v2685 = vshrl.u32 %v2684, 7
    %v2686 = vsub.s32 0, %v2685
    %v2687 = vrot.slane %v2682, %v2686
    %v2689 = vadd.f32 %v2673, %v2687
    %v2690 = vadd.f32 %v2679, %v2687
    %2691 = vst.msk [vmem:[#allocation4] sm:$0xff] %vm2047, %v2689
    %2692 = vst.msk [vmem:[#allocation4 + $0x8] sm:$0xff] %vm2047, %v2690
    // Predicated region
    $region26: #{tpu_custom_call.1} parent=1 // pred_check
      _
    $region27: #{tpu_custom_call.1} parent=1 // pred_check_branch
      %2694 = sbr.rel (0) target = $region29
    $region28: #{tpu_custom_call.1} parent=1 // pred_region
      %s2696 = ssub.s32 256, 256
      %2697 = vsyncadd [#allocation3], %s2696
      %s2698 = sshll.u32 [#allocation2], 4
      %s2699 = int_to_ptr.vmem [resolvable:$true] %s2698
      %2704 = dma.vmem_to_hbm [thread:$0]  %s2699, 256, %s6, [#allocation3], 128, 128, 8
    $region29: #{tpu_custom_call.1} parent=1 // pred_fallthru
      _
    // Predicated region
    $region30: #{tpu_custom_call.1} parent=1 // pred_check
      _
    $region31: #{tpu_custom_call.1} parent=1 // pred_check_branch
      %2706 = sbr.rel (0) target = $region33
    $region32: #{tpu_custom_call.1} parent=1 // pred_region
      %s2708 = ssub.s32 256, 256
      %2709 = vsyncadd [#allocation5], %s2708
      %s2710 = sshll.u32 [#allocation4], 4
      %s2711 = int_to_ptr.vmem [resolvable:$true] %s2710
      %2716 = dma.vmem_to_hbm [thread:$0]  %s2711, 256, %s7, [#allocation5], 128, 128, 8
    $region33: #{tpu_custom_call.1} parent=1 // pred_fallthru
      _
    // Predicated region
    $region34: #{tpu_custom_call.1} parent=1 // pred_check
      _
    $region35: #{tpu_custom_call.1} parent=1 // pred_check_branch
      %2718 = sbr.rel (0) target = $region37
    $region36: #{tpu_custom_call.1} parent=1 // pred_region
      %2719 = dma.done [#allocation3], 256
    $region37: #{tpu_custom_call.1} parent=1 // pred_fallthru
      _
    // Predicated region
    $region38: #{tpu_custom_call.1} parent=1 // pred_check
      _
    $region39: #{tpu_custom_call.1} parent=1 // pred_check_branch
      %2721 = sbr.rel (0) target = $region41
    $region40: #{tpu_custom_call.1} parent=1 // pred_region
      %2722 = dma.done [#allocation5], 256
    $region41: #{tpu_custom_call.1} parent=1 // pred_fallthru
      _
    %2723 = vsyncpa [#allocation3], 1
    %2724 = vsyncpa [#allocation5], 1

</llo_original>
